<compile_context>
chip_gen: v7x
topology: tpu7x:2x2x1
jax: 0.10.0
libtpu: 0.0.40
codegen_flags: <defaults>
</compile_context>

<pallas_src>
import jax
import jax.numpy as jnp
from jax.experimental import pallas as pl
from jax.experimental.pallas import tpu as pltpu


def sage_encoder_kernel(
    x_hbm,        # [NP, FP]     bf16  node features (HBM / ANY, DMA'd once)
    a_ref,        # [TM, NP]     int8  row stripe of raw 0/1 adjacency counts
    dinv_ref,     # [TM, 1]      f32   1/deg for this row stripe
    pool_ref,     # [BP, TM]     f32   column tile of the mean-pool matrix
    wsage_ref,    # [1, 2FP, FP] bf16  fused [Wl;Wr] (pre-transposed) for layer l
    bsage_ref,    # [1, 1, FP]   f32   bias for layer l
    fw1_ref, fb1_ref, fw2_ref, fb2_ref,   # f32 head weights (small, resident)
    out_ref,      # [BP, NOUTP]  f32
    hb_ref,       # [NP, FP]     bf16  activations of the layer being CONSUMED
    hf_ref,       # [NP, FP]     f32   activations of the layer being PRODUCED
    h2_ref,       # [TM, 2FP]    bf16  staging buffer [agg | h_root]
    pooled_ref,   # [BP, FP]     f32   pooled-graph accumulator
    x_sem,        #                    DMA semaphore for the one-shot x copy
):
    f32 = jnp.float32
    bf16 = jnp.bfloat16
    l = pl.program_id(0)
    r = pl.program_id(1)
    nl = pl.num_programs(0)
    nr = pl.num_programs(1)
    tm = a_ref.shape[0]
    fp = hb_ref.shape[1]
    row0 = pl.multiple_of(r * tm, tm)

    # First grid step: DMA the (pre-cast bf16) node features straight into the
    # consumed-activation scratch.  No resident f32 copy of x is kept.
    @pl.when(jnp.logical_and(l == 0, r == 0))
    def _():
        cp = pltpu.make_async_copy(x_hbm, hb_ref, x_sem)
        cp.start()
        cp.wait()

    # Mean-neighbor aggregation for this row stripe: int8 counts -> bf16 MXU
    # operand (exact), f32 accumulation, exact f32 normalization post-matmul.
    agg = jnp.dot(a_ref[...].astype(bf16), hb_ref[...],
                  preferred_element_type=f32)                 # [TM, FP]
    agg = agg * dinv_ref[...]

    # Fused SAGE update from a [TM, 2FP] bf16 staging buffer (two lane-aligned
    # stores instead of a lane-axis concat); 2FP-deep contraction fills the MXU.
    h2_ref[:, :fp] = agg.astype(bf16)
    h2_ref[:, fp:] = hb_ref[pl.ds(row0, tm), :]               # bf16 root term, no cast
    upd = jnp.dot(h2_ref[...], wsage_ref[0],
                  preferred_element_type=f32) + bsage_ref[0]
    # Uniform per-layer ReLU == the module's inter-layer ReLUs + post-stack ReLU
    # (ReLU is idempotent), applied here in f32.
    h_new = jnp.maximum(upd, 0.0)                             # [TM, FP] f32

    # Produced activations only need storing when another SAGE layer follows.
    @pl.when(l < nl - 1)
    def _():
        hf_ref[pl.ds(row0, tm), :] = h_new

    # Last layer: fold global mean pooling into the stripe loop so it hides under
    # the adjacency stream (no serial full-activation re-read at the end).
    @pl.when(jnp.logical_and(l == nl - 1, r == 0))
    def _():
        pooled_ref[...] = jnp.zeros_like(pooled_ref)

    @pl.when(l == nl - 1)
    def _():
        pooled_ref[...] += jnp.dot(pool_ref[...], h_new,
                                   preferred_element_type=f32)

    # Layer boundary: publish the new activations ONCE, already cast to bf16.
    # (Replaces both the per-stripe full-buffer cast and the f32->f32 copy of v2.)
    @pl.when(jnp.logical_and(r == nr - 1, l < nl - 1))
    def _():
        hb_ref[...] = hf_ref[...].astype(bf16)

    # Final grid step: fc1 -> ReLU -> fc2 head on the pooled graph embeddings.
    @pl.when(jnp.logical_and(r == nr - 1, l == nl - 1))
    def _():
        z = jnp.maximum(
            jnp.dot(pooled_ref[...], fw1_ref[...], preferred_element_type=f32)
            + fb1_ref[...], 0.0)
        out_ref[...] = (jnp.dot(z, fw2_ref[...], preferred_element_type=f32)
                        + fb2_ref[...])


def _round_up(v, m):
    return ((v + m - 1) // m) * m


def _vmem_capacity_bytes():
    try:
        return int(pltpu.get_tpu_info().vmem_capacity_bytes)
    except Exception:
        return 64 << 20          # conservative default: v7x per-TensorCore VMEM


def _default_row_tile():
    # v6e/v7x MXU is 256-wide -> 256-row stripes; v5e (4x128^2 MXU) keeps 128.
    try:
        kind = jax.devices()[0].device_kind.lower()
        if "v5 lite" in kind or "v5e" in kind or "v5litepod" in kind:
            return 128
    except Exception:
        pass
    return 256


def sage_encoder_forward(x, a01, inv_deg, pool, params, dims, *, row_tile=None):
    """Pads/fuses parameters once, then runs the fused Pallas kernel."""
    n_in, sage_hidden, nhid, nout = dims
    N = x.shape[0]
    B = pool.shape[0]

    if row_tile is None:
        row_tile = _default_row_tile()
    row_tile = max(128, _round_up(row_tile, 128))

    FP = _round_up(max(n_in, sage_hidden, nhid), 128)   # common padded feature width
    NOUTP = _round_up(nout, 128)
    NP = _round_up(N, row_tile)
    BP = _round_up(B, 8)

    (wl0, wr0, b0, wl1, wr1, b1, wl2, wr2, b2, wl3, wr3, b3,
     fw1, fb1, fw2, fb2) = params

    def pad2(a, s0, s1):
        return jnp.pad(a, ((0, s0 - a.shape[0]), (0, s1 - a.shape[1])))

    def fuse(wl, wr):
        # pre-transpose to [din, dout], zero-pad, concat along the contraction dim
        return jnp.concatenate([pad2(wl.T, FP, FP), pad2(wr.T, FP, FP)], axis=0)

    # bf16 fused SAGE weights (MXU-native); biases stay f32 (added post-matmul).
    wsage = jnp.stack([fuse(wl0, wr0), fuse(wl1, wr1),
                       fuse(wl2, wr2), fuse(wl3, wr3)]).astype(jnp.bfloat16)
    bsage = jnp.stack([pad2(b0, 1, FP), pad2(b1, 1, FP),
                       pad2(b2, 1, FP), pad2(b3, 1, FP)])          # [4, 1, FP] f32

    fw1p = pad2(fw1.T, FP, FP)
    fb1p = pad2(fb1, 1, FP)
    fw2p = pad2(fw2.T, FP, NOUTP)
    fb2p = pad2(fb2, 1, NOUTP)

    # Padding invariant (keeps padded rows from leaking into real outputs):
    #   * padded COLUMNS of a_p and pool are zero, so padded-node activations
    #     (which become ReLU(bias) after layer 0) never reach real rows or the
    #     pooled output;  * dinv pads to 0 so padded-row aggregation is exactly 0;
    #   * padded feature columns stay 0 because wsage/bias pad columns are 0.
    x_p = pad2(x, NP, FP).astype(jnp.bfloat16)
    a_p = pad2(a01, NP, NP).astype(jnp.int8)       # 0/1/2... counts: exact in int8
    d_p = pad2(inv_deg, NP, 1)
    p_p = pad2(pool, BP, NP)

    L = 4
    R = NP // row_tile

    flops = int(L * (2 * NP * NP * FP + 2 * NP * (2 * FP) * FP)
                + 2 * BP * NP * FP + 2 * BP * FP * FP + 2 * BP * FP * NOUTP)
    bytes_accessed = int(L * NP * NP * 1 + NP * FP * 2 + L * NP * 4
                         + L * BP * NP * 4
                         + L * (2 * FP * FP * 2 + FP * 4)
                         + (FP * FP + FP * NOUTP + FP + NOUTP) * 4
                         + BP * NOUTP * 4)

    vmem_need = (
        2 * row_tile * NP * 1                        # int8 adjacency stripe (dbl-buf)
        + 2 * row_tile * NP * 2                      # transient bf16 stripe cast
        + 2 * row_tile * 128 * 4                     # 1/deg stripe (lane-padded)
        + 2 * BP * row_tile * 4                      # pool column tile
        + 2 * (2 * FP * FP * 2 + 8 * FP * 4)         # fused SAGE W (bf16) + bias
        + 2 * (FP * FP * 4 + FP * NOUTP * 4 + 8 * FP * 4 + 8 * NOUTP * 4)   # head
        + NP * FP * (2 + 4)                          # hb (bf16) + hf (f32) scratch
        + row_tile * 2 * FP * 2                      # h2 staging
        + BP * FP * 4 + 2 * BP * NOUTP * 4           # pooled acc + output block
        + (2 << 20))                                 # misc headroom
    cap = _vmem_capacity_bytes()
    # generation-dependent budget: ~102 MiB on v5e/v6e (128 MiB VMEM), ~51 MiB on v7x
    vmem_limit = int(min(max(int(1.25 * vmem_need), 16 << 20), int(0.8 * cap)))

    out = pl.pallas_call(
        sage_encoder_kernel,
        out_shape=jax.ShapeDtypeStruct((BP, NOUTP), jnp.float32),
        grid_spec=pltpu.PrefetchScalarGridSpec(
            num_scalar_prefetch=0,
            grid=(L, R),
            in_specs=[
                pl.BlockSpec(memory_space=pl.ANY),                     # x (HBM)
                pl.BlockSpec((row_tile, NP), lambda l, r: (r, 0)),     # adjacency stripe
                pl.BlockSpec((row_tile, 1), lambda l, r: (r, 0)),      # 1/deg stripe
                pl.BlockSpec((BP, row_tile), lambda l, r: (0, r)),     # pool column tile
                pl.BlockSpec((1, 2 * FP, FP), lambda l, r: (l, 0, 0)), # fused SAGE W
                pl.BlockSpec((1, 1, FP), lambda l, r: (l, 0, 0)),      # SAGE bias
                pl.BlockSpec((FP, FP), lambda l, r: (0, 0)),           # fc1 W (pre-T)
                pl.BlockSpec((1, FP), lambda l, r: (0, 0)),            # fc1 b
                pl.BlockSpec((FP, NOUTP), lambda l, r: (0, 0)),        # fc2 W (pre-T)
                pl.BlockSpec((1, NOUTP), lambda l, r: (0, 0)),         # fc2 b
            ],
            out_specs=pl.BlockSpec((BP, NOUTP), lambda l, r: (0, 0)),
            scratch_shapes=[
                pltpu.VMEM((NP, FP), jnp.bfloat16),            # hb (consumed layer)
                pltpu.VMEM((NP, FP), jnp.float32),             # hf (produced layer)
                pltpu.VMEM((row_tile, 2 * FP), jnp.bfloat16),  # h2 staging
                pltpu.VMEM((BP, FP), jnp.float32),             # pooled accumulator
                pltpu.SemaphoreType.DMA,                       # x one-shot DMA sem
            ],
        ),
        compiler_params=pltpu.CompilerParams(
            dimension_semantics=("arbitrary", "arbitrary"),
            vmem_limit_bytes=vmem_limit,
        ),
        cost_estimate=pl.CostEstimate(flops=flops, transcendentals=0,
                                      bytes_accessed=bytes_accessed),
    )(x_p, a_p, d_p, p_p, wsage, bsage, fw1p, fb1p, fw2p, fb2p)
    return out[:B, :nout]


def build_graph_matrices(edge_index, batch, num_nodes, num_graphs):
    """Plain-JAX glue: raw adjacency counts, 1/deg, and mean-pool matrix."""
    src, dst = edge_index[0], edge_index[1]
    a01 = jnp.zeros((num_nodes, num_nodes), jnp.float32).at[dst, src].add(1.0)
    deg = jnp.clip(jnp.sum(a01, axis=1, keepdims=True), 1.0, None)
    inv_deg = 1.0 / deg                                    # applied in f32 in-kernel
    onehot = (batch[None, :] == jnp.arange(num_graphs)[:, None]).astype(jnp.float32)
    counts = jnp.clip(jnp.sum(onehot, axis=1, keepdims=True), 1.0, None)
    pool = onehot / counts                                 # global_mean_pool
    return a01, inv_deg, pool


def init_params(key, n_in, sage_hidden, nhid, nout):
    """Deterministic parameter init (shapes follow the PyTorch module)."""
    dims = [(sage_hidden, n_in),         # SAGEConv 0: in -> hidden
            (sage_hidden, sage_hidden),  # SAGEConv 1
            (sage_hidden, sage_hidden),  # SAGEConv 2
            (nhid, sage_hidden)]         # SAGEConv 3: hidden -> out_channels(=nhid)
    params = []
    keys = jax.random.split(key, 4 * 3 + 4)
    k = 0
    for (dout, din) in dims:
        wl = 0.1 * jax.random.normal(keys[k], (dout, din), jnp.float32); k += 1
        wr = 0.1 * jax.random.normal(keys[k], (dout, din), jnp.float32); k += 1
        b = 0.1 * jax.random.normal(keys[k], (1, dout), jnp.float32); k += 1
        params += [wl, wr, b]
    fw1 = 0.1 * jax.random.normal(keys[k], (nhid, sage_hidden), jnp.float32); k += 1
    fb1 = 0.1 * jax.random.normal(keys[k], (1, nhid), jnp.float32); k += 1
    fw2 = 0.1 * jax.random.normal(keys[k], (nout, nhid), jnp.float32); k += 1
    fb2 = 0.1 * jax.random.normal(keys[k], (1, nout), jnp.float32); k += 1
    params += [fw1, fb1, fw2, fb2]
    return params


def reference_forward(x, a01, inv_deg, pool, params, mimic_kernel=False):
    """Pure-JAX reference; mimic_kernel=True replicates the kernel's bf16 numerics."""
    (wl0, wr0, b0, wl1, wr1, b1, wl2, wr2, b2, wl3, wr3, b3,
     fw1, fb1, fw2, fb2) = params
    f32 = jnp.float32
    hi = jax.lax.Precision.HIGHEST
    h = x
    layers = [(wl0, wr0, b0), (wl1, wr1, b1), (wl2, wr2, b2), (wl3, wr3, b3)]
    for i, (wl, wr, b) in enumerate(layers):
        if mimic_kernel:
            hb = h.astype(jnp.bfloat16)
            agg = jnp.dot(a01.astype(jnp.bfloat16), hb,
                          preferred_element_type=f32) * inv_deg
            h2 = jnp.concatenate([agg.astype(jnp.bfloat16), hb], axis=-1)
            w = jnp.concatenate([wl.T, wr.T], axis=0).astype(jnp.bfloat16)
            h = jnp.maximum(jnp.dot(h2, w, preferred_element_type=f32) + b, 0.0)
        else:
            agg = (a01 * inv_deg) @ h
            h = agg @ wl.T + h @ wr.T + b
            if i < 3:
                h = jnp.maximum(h, 0.0)
    if not mimic_kernel:
        h = jnp.maximum(h, 0.0)
    pooled = jnp.dot(pool, h, precision=hi)
    z = jnp.maximum(jnp.dot(pooled, fw1.T, precision=hi) + fb1, 0.0)
    return jnp.dot(z, fw2.T, precision=hi) + fb2


if __name__ == "__main__":
    # Small, module-consistent shapes
    N = 16          # total nodes in the batch
    E = 40          # edges
    B = 2           # graphs in the batch
    n_in = 8
    sage_hidden = 32
    nhid = 32       # fc1 expects sage_hidden inputs -> sage_hidden == nhid
    nout = 16

    key = jax.random.PRNGKey(0)
    k_x, k_e, k_p = jax.random.split(key, 3)

    x = jax.random.normal(k_x, (N, n_in), jnp.float32)
    edge_index = jax.random.randint(k_e, (2, E), 0, N, jnp.int32)
    batch = jnp.concatenate([jnp.zeros((N // 2,), jnp.int32),
                             jnp.ones((N - N // 2,), jnp.int32)])

    a01, inv_deg, pool = build_graph_matrices(edge_index, batch, N, B)
    params = init_params(k_p, n_in, sage_hidden, nhid, nout)

    out = sage_encoder_forward(x, a01, inv_deg, pool, params,
                               (n_in, sage_hidden, nhid, nout))
    out = jax.block_until_ready(out)

    # Tight check vs a reference that mimics the kernel's bf16 numerics exactly.
    ref_mimic = reference_forward(x, a01, inv_deg, pool, params, mimic_kernel=True)
    if not jnp.allclose(out, ref_mimic, atol=2e-3, rtol=2e-3):
        err = float(jnp.max(jnp.abs(out - ref_mimic)))
        raise AssertionError(
            f"Pallas output mismatch vs bf16-matched reference (max abs err {err})")
    # Loose sanity check vs the pure-f32 reference (bf16 rounding only).
    ref_f32 = reference_forward(x, a01, inv_deg, pool, params, mimic_kernel=False)
    if float(jnp.max(jnp.abs(out - ref_f32))) > 1e-1:
        raise AssertionError("Pallas output too far from f32 reference")

    print("KERNEL_OK")
</pallas_src>

<mosaic_0001>
module attributes {stable_mosaic.version = 11 : i64} {
  func.func @sage_encoder_kernel(%arg0: i32, %arg1: i32, %arg2: memref<256x128xbf16, #tpu.memory_space<any>>, %arg3: memref<256x256xi8, #tpu.memory_space<vmem>>, %arg4: memref<256x1xf32, #tpu.memory_space<vmem>>, %arg5: memref<8x256xf32, #tpu.memory_space<vmem>>, %arg6: memref<1x256x128xbf16, #tpu.memory_space<vmem>>, %arg7: memref<1x1x128xf32, #tpu.memory_space<vmem>>, %arg8: memref<128x128xf32, #tpu.memory_space<vmem>>, %arg9: memref<1x128xf32, #tpu.memory_space<vmem>>, %arg10: memref<128x128xf32, #tpu.memory_space<vmem>>, %arg11: memref<1x128xf32, #tpu.memory_space<vmem>>, %arg12: memref<8x128xf32, #tpu.memory_space<vmem>>, %arg13: memref<256x128xbf16, #tpu.memory_space<vmem>>, %arg14: memref<256x128xf32, #tpu.memory_space<vmem>>, %arg15: memref<256x256xbf16, #tpu.memory_space<vmem>>, %arg16: memref<8x128xf32, #tpu.memory_space<vmem>>, %arg17: memref<!tpu.dma_semaphore, #tpu.memory_space<semaphore_mem>>) attributes {dimension_semantics = [#tpu.dimension_semantics<arbitrary>, #tpu.dimension_semantics<arbitrary>], iteration_bounds = array<i64: 4, 1>, scalar_prefetch = 0 : i64, scratch_operands = 5 : i64, tpu.core_type = #tpu.core_type<tc>, window_params = [{}, {transform_indices = @transform_1, window_bounds = array<i64: 256, 256>}, {transform_indices = @transform_2, window_bounds = array<i64: 256, 1>}, {transform_indices = @transform_3, window_bounds = array<i64: 8, 256>}, {transform_indices = @transform_4, window_bounds = array<i64: 1, 256, 128>}, {transform_indices = @transform_5, window_bounds = array<i64: 1, 1, 128>}, {pipeline_mode = #tpu.pipeline_mode<synchronous>, transform_indices = @transform_6, window_bounds = array<i64: 128, 128>}, {pipeline_mode = #tpu.pipeline_mode<synchronous>, transform_indices = @transform_7, window_bounds = array<i64: 1, 128>}, {pipeline_mode = #tpu.pipeline_mode<synchronous>, transform_indices = @transform_8, window_bounds = array<i64: 128, 128>}, {pipeline_mode = #tpu.pipeline_mode<synchronous>, transform_indices = @transform_9, window_bounds = array<i64: 1, 128>}, {pipeline_mode = #tpu.pipeline_mode<synchronous>, transform_indices = @transform_10, window_bounds = array<i64: 8, 128>}]} {
    %c256_i32 = arith.constant 256 : i32
    %0 = arith.muli %arg1, %c256_i32 : i32
    %1 = tpu.assume_multiple %0, 256 : i32
    %c0_i32 = arith.constant 0 : i32
    %2 = arith.cmpi eq, %arg0, %c0_i32 : i32
    %c0_i32_0 = arith.constant 0 : i32
    %3 = arith.cmpi eq, %arg1, %c0_i32_0 : i32
    %4 = arith.andi %2, %3 : i1
    %5 = arith.extui %4 : i1 to i32
    %c0_i32_1 = arith.constant 0 : i32
    %6 = arith.cmpi ne, %5, %c0_i32_1 : i32
    scf.if %6 {
      tpu.enqueue_dma source(%arg2 : memref<256x128xbf16, #tpu.memory_space<any>>) target(%arg13 : memref<256x128xbf16, #tpu.memory_space<vmem>>) target_semaphore(%arg17 : memref<!tpu.dma_semaphore, #tpu.memory_space<semaphore_mem>>)
      tpu.wait_dma2 semaphore(%arg17 : memref<!tpu.dma_semaphore, #tpu.memory_space<semaphore_mem>>) src(%arg2 : memref<256x128xbf16, #tpu.memory_space<any>>) dst(%arg13 : memref<256x128xbf16, #tpu.memory_space<vmem>>)
    } else {
    }
    %c0 = arith.constant 0 : index
    %c0_2 = arith.constant 0 : index
    %7 = vector.load %arg3[%c0, %c0_2] : memref<256x256xi8, #tpu.memory_space<vmem>>, vector<256x256xi8>
    %8 = arith.sitofp %7 : vector<256x256xi8> to vector<256x256xbf16>
    %c0_3 = arith.constant 0 : index
    %c0_4 = arith.constant 0 : index
    %9 = vector.load %arg13[%c0_3, %c0_4] : memref<256x128xbf16, #tpu.memory_space<vmem>>, vector<256x128xbf16>
    %cst = arith.constant dense<0.000000e+00> : vector<256x128xf32>
    %10 = tpu.matmul %8, %9, %cst {dimension_numbers = #tpu.dot_dimension_numbers<[1], [0], [0], [1], [0, 0, 1, 1], [], []>} : vector<256x256xbf16>, vector<256x128xbf16>, vector<256x128xf32> -> vector<256x128xf32>
    %c0_5 = arith.constant 0 : index
    %c0_6 = arith.constant 0 : index
    %11 = vector.load %arg4[%c0_5, %c0_6] : memref<256x1xf32, #tpu.memory_space<vmem>>, vector<256x1xf32>
    %12 = vector.broadcast %11 : vector<256x1xf32> to vector<256x128xf32>
    %13 = arith.mulf %10, %12 : vector<256x128xf32>
    %14 = arith.truncf %13 : vector<256x128xf32> to vector<256x128xbf16>
    %c0_7 = arith.constant 0 : index
    %c0_8 = arith.constant 0 : index
    %15 = vector.load %arg15[%c0_7, %c0_8] : memref<256x256xbf16, #tpu.memory_space<vmem>>, vector<256x128xbf16>
    tpu.vector_store %arg15[%c0_7, %c0_8], %14 {strides = array<i32>} : memref<256x256xbf16, #tpu.memory_space<vmem>>, vector<256x128xbf16>,
    %16 = arith.index_cast %1 : i32 to index
    %c0_9 = arith.constant 0 : index
    %17 = vector.load %arg13[%16, %c0_9] : memref<256x128xbf16, #tpu.memory_space<vmem>>, vector<256x128xbf16>
    %c0_10 = arith.constant 0 : index
    %c128 = arith.constant 128 : index
    %18 = vector.load %arg15[%c0_10, %c128] : memref<256x256xbf16, #tpu.memory_space<vmem>>, vector<256x128xbf16>
    tpu.vector_store %arg15[%c0_10, %c128], %17 {strides = array<i32>} : memref<256x256xbf16, #tpu.memory_space<vmem>>, vector<256x128xbf16>,
    %c0_11 = arith.constant 0 : index
    %c0_12 = arith.constant 0 : index
    %19 = vector.load %arg15[%c0_11, %c0_12] : memref<256x256xbf16, #tpu.memory_space<vmem>>, vector<256x256xbf16>
    %c0_13 = arith.constant 0 : index
    %c0_14 = arith.constant 0 : index
    %c0_15 = arith.constant 0 : index
    %20 = vector.load %arg6[%c0_13, %c0_14, %c0_15] : memref<1x256x128xbf16, #tpu.memory_space<vmem>>, vector<1x256x128xbf16>
    %21 = vector.shape_cast %20 : vector<1x256x128xbf16> to vector<256x128xbf16>
    %cst_16 = arith.constant dense<0.000000e+00> : vector<256x128xf32>
    %22 = tpu.matmul %19, %21, %cst_16 {dimension_numbers = #tpu.dot_dimension_numbers<[1], [0], [0], [1], [0, 0, 1, 1], [], []>} : vector<256x256xbf16>, vector<256x128xbf16>, vector<256x128xf32> -> vector<256x128xf32>
    %c0_17 = arith.constant 0 : index
    %c0_18 = arith.constant 0 : index
    %c0_19 = arith.constant 0 : index
    %23 = vector.load %arg7[%c0_17, %c0_18, %c0_19] : memref<1x1x128xf32, #tpu.memory_space<vmem>>, vector<1x1x128xf32>
    %24 = vector.shape_cast %23 : vector<1x1x128xf32> to vector<1x128xf32>
    %25 = vector.broadcast %24 : vector<1x128xf32> to vector<256x128xf32>
    %26 = arith.addf %22, %25 : vector<256x128xf32>
    %cst_20 = arith.constant 0.000000e+00 : f32
    %27 = vector.broadcast %cst_20 : f32 to vector<256x128xf32>
    %28 = arith.maximumf %26, %27 : vector<256x128xf32>
    %c3_i32 = arith.constant 3 : i32
    %29 = arith.cmpi slt, %arg0, %c3_i32 : i32
    %30 = arith.extui %29 : i1 to i32
    %c0_i32_21 = arith.constant 0 : i32
    %31 = arith.cmpi ne, %30, %c0_i32_21 : i32
    scf.if %31 {
      %50 = arith.index_cast %1 : i32 to index
      %c0_33 = arith.constant 0 : index
      %51 = vector.load %arg14[%50, %c0_33] : memref<256x128xf32, #tpu.memory_space<vmem>>, vector<256x128xf32>
      tpu.vector_store %arg14[%50, %c0_33], %28 {strides = array<i32>} : memref<256x128xf32, #tpu.memory_space<vmem>>, vector<256x128xf32>,
    } else {
    }
    %c3_i32_22 = arith.constant 3 : i32
    %32 = arith.cmpi eq, %arg0, %c3_i32_22 : i32
    %c0_i32_23 = arith.constant 0 : i32
    %33 = arith.cmpi eq, %arg1, %c0_i32_23 : i32
    %34 = arith.andi %32, %33 : i1
    %35 = arith.extui %34 : i1 to i32
    %c0_i32_24 = arith.constant 0 : i32
    %36 = arith.cmpi ne, %35, %c0_i32_24 : i32
    scf.if %36 {
      %cst_33 = arith.constant 0.000000e+00 : f32
      %50 = vector.broadcast %cst_33 : f32 to vector<8x128xf32>
      %c0_34 = arith.constant 0 : index
      %c0_35 = arith.constant 0 : index
      %51 = vector.load %arg16[%c0_34, %c0_35] : memref<8x128xf32, #tpu.memory_space<vmem>>, vector<8x128xf32>
      tpu.vector_store %arg16[%c0_34, %c0_35], %50 {strides = array<i32>} : memref<8x128xf32, #tpu.memory_space<vmem>>, vector<8x128xf32>,
    } else {
    }
    %c3_i32_25 = arith.constant 3 : i32
    %37 = arith.cmpi eq, %arg0, %c3_i32_25 : i32
    %38 = arith.extui %37 : i1 to i32
    %c0_i32_26 = arith.constant 0 : i32
    %39 = arith.cmpi ne, %38, %c0_i32_26 : i32
    scf.if %39 {
      %c0_33 = arith.constant 0 : index
      %c0_34 = arith.constant 0 : index
      %50 = vector.load %arg16[%c0_33, %c0_34] : memref<8x128xf32, #tpu.memory_space<vmem>>, vector<8x128xf32>
      %c0_35 = arith.constant 0 : index
      %c0_36 = arith.constant 0 : index
      %51 = vector.load %arg5[%c0_35, %c0_36] : memref<8x256xf32, #tpu.memory_space<vmem>>, vector<8x256xf32>
      %cst_37 = arith.constant dense<0.000000e+00> : vector<8x128xf32>
      %52 = tpu.matmul %51, %28, %cst_37 {dimension_numbers = #tpu.dot_dimension_numbers<[1], [0], [0], [1], [0, 0, 1, 1], [], []>} : vector<8x256xf32>, vector<256x128xf32>, vector<8x128xf32> -> vector<8x128xf32>
      %53 = arith.addf %50, %52 : vector<8x128xf32>
      %c0_38 = arith.constant 0 : index
      %c0_39 = arith.constant 0 : index
      %54 = vector.load %arg16[%c0_38, %c0_39] : memref<8x128xf32, #tpu.memory_space<vmem>>, vector<8x128xf32>
      tpu.vector_store %arg16[%c0_38, %c0_39], %53 {strides = array<i32>} : memref<8x128xf32, #tpu.memory_space<vmem>>, vector<8x128xf32>,
    } else {
    }
    %c0_i32_27 = arith.constant 0 : i32
    %40 = arith.cmpi eq, %arg1, %c0_i32_27 : i32
    %c3_i32_28 = arith.constant 3 : i32
    %41 = arith.cmpi slt, %arg0, %c3_i32_28 : i32
    %42 = arith.andi %40, %41 : i1
    %43 = arith.extui %42 : i1 to i32
    %c0_i32_29 = arith.constant 0 : i32
    %44 = arith.cmpi ne, %43, %c0_i32_29 : i32
    scf.if %44 {
      %c0_33 = arith.constant 0 : index
      %c0_34 = arith.constant 0 : index
      %50 = vector.load %arg14[%c0_33, %c0_34] : memref<256x128xf32, #tpu.memory_space<vmem>>, vector<256x128xf32>
      %51 = arith.truncf %50 : vector<256x128xf32> to vector<256x128xbf16>
      %c0_35 = arith.constant 0 : index
      %c0_36 = arith.constant 0 : index
      %52 = vector.load %arg13[%c0_35, %c0_36] : memref<256x128xbf16, #tpu.memory_space<vmem>>, vector<256x128xbf16>
      tpu.vector_store %arg13[%c0_35, %c0_36], %51 {strides = array<i32>} : memref<256x128xbf16, #tpu.memory_space<vmem>>, vector<256x128xbf16>,
    } else {
    }
    %c0_i32_30 = arith.constant 0 : i32
    %45 = arith.cmpi eq, %arg1, %c0_i32_30 : i32
    %c3_i32_31 = arith.constant 3 : i32
    %46 = arith.cmpi eq, %arg0, %c3_i32_31 : i32
    %47 = arith.andi %45, %46 : i1
    %48 = arith.extui %47 : i1 to i32
    %c0_i32_32 = arith.constant 0 : i32
    %49 = arith.cmpi ne, %48, %c0_i32_32 : i32
    scf.if %49 {
      %c0_33 = arith.constant 0 : index
      %c0_34 = arith.constant 0 : index
      %50 = vector.load %arg16[%c0_33, %c0_34] : memref<8x128xf32, #tpu.memory_space<vmem>>, vector<8x128xf32>
      %c0_35 = arith.constant 0 : index
      %c0_36 = arith.constant 0 : index
      %51 = vector.load %arg8[%c0_35, %c0_36] : memref<128x128xf32, #tpu.memory_space<vmem>>, vector<128x128xf32>
      %cst_37 = arith.constant dense<0.000000e+00> : vector<8x128xf32>
      %52 = tpu.matmul %50, %51, %cst_37 {dimension_numbers = #tpu.dot_dimension_numbers<[1], [0], [0], [1], [0, 0, 1, 1], [], []>} : vector<8x128xf32>, vector<128x128xf32>, vector<8x128xf32> -> vector<8x128xf32>
      %c0_38 = arith.constant 0 : index
      %c0_39 = arith.constant 0 : index
      %53 = vector.load %arg9[%c0_38, %c0_39] : memref<1x128xf32, #tpu.memory_space<vmem>>, vector<1x128xf32>
      %54 = vector.broadcast %53 : vector<1x128xf32> to vector<8x128xf32>
      %55 = arith.addf %52, %54 : vector<8x128xf32>
      %cst_40 = arith.constant 0.000000e+00 : f32
      %56 = vector.broadcast %cst_40 : f32 to vector<8x128xf32>
      %57 = arith.maximumf %55, %56 : vector<8x128xf32>
      %c0_41 = arith.constant 0 : index
      %c0_42 = arith.constant 0 : index
      %58 = vector.load %arg10[%c0_41, %c0_42] : memref<128x128xf32, #tpu.memory_space<vmem>>, vector<128x128xf32>
      %cst_43 = arith.constant dense<0.000000e+00> : vector<8x128xf32>
      %59 = tpu.matmul %57, %58, %cst_43 {dimension_numbers = #tpu.dot_dimension_numbers<[1], [0], [0], [1], [0, 0, 1, 1], [], []>} : vector<8x128xf32>, vector<128x128xf32>, vector<8x128xf32> -> vector<8x128xf32>
      %c0_44 = arith.constant 0 : index
      %c0_45 = arith.constant 0 : index
      %60 = vector.load %arg11[%c0_44, %c0_45] : memref<1x128xf32, #tpu.memory_space<vmem>>, vector<1x128xf32>
      %61 = vector.broadcast %60 : vector<1x128xf32> to vector<8x128xf32>
      %62 = arith.addf %59, %61 : vector<8x128xf32>
      %c0_46 = arith.constant 0 : index
      %c0_47 = arith.constant 0 : index
      %63 = vector.load %arg12[%c0_46, %c0_47] : memref<8x128xf32, #tpu.memory_space<vmem>>, vector<8x128xf32>
      tpu.vector_store %arg12[%c0_46, %c0_47], %62 {strides = array<i32>} : memref<8x128xf32, #tpu.memory_space<vmem>>, vector<8x128xf32>,
    } else {
    }
    return
  }
  func.func @transform_1(%arg0: i32, %arg1: i32) -> (i32, i32) {
    %c0_i32 = arith.constant 0 : i32
    %c0_i32_0 = arith.constant 0 : i32
    return %arg1, %c0_i32 : i32, i32
  }
  func.func @transform_2(%arg0: i32, %arg1: i32) -> (i32, i32) {
    %c0_i32 = arith.constant 0 : i32
    %c0_i32_0 = arith.constant 0 : i32
    return %arg1, %c0_i32 : i32, i32
  }
  func.func @transform_3(%arg0: i32, %arg1: i32) -> (i32, i32) {
    %c0_i32 = arith.constant 0 : i32
    %c0_i32_0 = arith.constant 0 : i32
    return %c0_i32, %arg1 : i32, i32
  }
  func.func @transform_4(%arg0: i32, %arg1: i32) -> (i32, i32, i32) {
    %c0_i32 = arith.constant 0 : i32
    %c0_i32_0 = arith.constant 0 : i32
    %c0_i32_1 = arith.constant 0 : i32
    return %arg0, %c0_i32, %c0_i32_0 : i32, i32, i32
  }
  func.func @transform_5(%arg0: i32, %arg1: i32) -> (i32, i32, i32) {
    %c0_i32 = arith.constant 0 : i32
    %c0_i32_0 = arith.constant 0 : i32
    %c0_i32_1 = arith.constant 0 : i32
    return %arg0, %c0_i32, %c0_i32_0 : i32, i32, i32
  }
  func.func @transform_6(%arg0: i32, %arg1: i32) -> (i32, i32) {
    %c0_i32 = arith.constant 0 : i32
    %c0_i32_0 = arith.constant 0 : i32
    %c0_i32_1 = arith.constant 0 : i32
    return %c0_i32, %c0_i32_0 : i32, i32
  }
  func.func @transform_7(%arg0: i32, %arg1: i32) -> (i32, i32) {
    %c0_i32 = arith.constant 0 : i32
    %c0_i32_0 = arith.constant 0 : i32
    %c0_i32_1 = arith.constant 0 : i32
    return %c0_i32, %c0_i32_0 : i32, i32
  }
  func.func @transform_8(%arg0: i32, %arg1: i32) -> (i32, i32) {
    %c0_i32 = arith.constant 0 : i32
    %c0_i32_0 = arith.constant 0 : i32
    %c0_i32_1 = arith.constant 0 : i32
    return %c0_i32, %c0_i32_0 : i32, i32
  }
  func.func @transform_9(%arg0: i32, %arg1: i32) -> (i32, i32) {
    %c0_i32 = arith.constant 0 : i32
    %c0_i32_0 = arith.constant 0 : i32
    %c0_i32_1 = arith.constant 0 : i32
    return %c0_i32, %c0_i32_0 : i32, i32
  }
  func.func @transform_10(%arg0: i32, %arg1: i32) -> (i32, i32) {
    %c0_i32 = arith.constant 0 : i32
    %c0_i32_0 = arith.constant 0 : i32
    %c0_i32_1 = arith.constant 0 : i32
    return %c0_i32, %c0_i32_0 : i32, i32
  }
}

</mosaic_0001>

<llo_original>
// kernel: tpu_custom_call.1
$region0: #{tpu_custom_call.1}
  #allocation0 [shape = 'u32[]', space=smem, size = 0x4, offset = 0x4, fixed_abs, tag = 'smem constant byte address 0x4 - core index']
  #allocation1 [shape = 'u32[144,128]{1,0:T(1,128)}', space=vmem, size = 0x12000, scoped, tag = 'internal scratch']
  #allocation2 [shape = 'bf16[256,128]{1,0:T(16,128)(2,1)}', space=vmem, size = 0x10000, scoped, tag = 'scratch operand']
  #allocation3 [shape = 'f32[256,128]{1,0:T(8,128)}', space=vmem, size = 0x20000, scoped, tag = 'scratch operand']
  #allocation4 [shape = 'bf16[256,256]{1,0:T(16,128)(2,1)}', space=vmem, size = 0x20000, scoped, tag = 'scratch operand']
  #allocation5 [shape = 'f32[8,128]{1,0:T(8,128)}', space=vmem, size = 0x1000, scoped, tag = 'scratch operand']
  #allocation6 [shape = 's32[1]{0}', space=sflag, size = 0x4, scoped, tag = 'scratch operand']
  #allocation16 [shape = 's32[]', space=sflag, size = 0x4, offset = 0, fixed_abs, tag = 'sflag constant byte address 0x0 - dummy sync flag']
  %s0 = inlined_call_operand.vmem [shape: bf16[256,128], index: 0, kind: input, shape index: {}]
  %s1 = inlined_call_operand.vmem [shape: s8[256,256], index: 1, kind: input, shape index: {}]
  %s2 = inlined_call_operand.vmem [shape: f32[256,1], index: 2, kind: input, shape index: {}]
  %s3 = inlined_call_operand.hbm [shape: f32[8,256], index: 3, kind: input, shape index: {}]
  %s4 = inlined_call_operand.hbm [shape: bf16[4,256,128], index: 4, kind: input, shape index: {}]
  %s5 = inlined_call_operand.vmem [shape: f32[4,1,128], index: 5, kind: input, shape index: {}]
  %s6 = inlined_call_operand.hbm [shape: f32[128,128], index: 6, kind: input, shape index: {}]
  %s7 = inlined_call_operand.vmem [shape: f32[1,128], index: 7, kind: input, shape index: {}]
  %s8 = inlined_call_operand.hbm [shape: f32[128,128], index: 8, kind: input, shape index: {}]
  %s9 = inlined_call_operand.vmem [shape: f32[1,128], index: 9, kind: input, shape index: {}]
  %s10 = inlined_call_operand.hbm [shape: f32[8,128], index: 10, kind: output, shape index: {}]
  %s11 = sld [smem:[#allocation0]]
  $region143: #{tpu_custom_call.1} parent=0
    _
  %s13 = ssub.s32 1, %s11
  %s14 = scalar_select 0, %s13, %s11
  $region1: #{tpu_custom_call.1} parent=0
    #allocation7 [shape = 'u8[8192]{0}', space=vmem, size = 0x2000, scoped, tag = 'input window, operand 3, single buffered']
    #allocation8 [shape = 's32[2]{0}', space=sflag, size = 0x8, scoped, tag = 'scoped memory for tpu_custom_call.1']
    #allocation9 [shape = 's32[2]{0}', space=sflag, size = 0x8, scoped, tag = 'scoped memory for tpu_custom_call.1']
    #allocation10 [shape = 'u8[131072]{0}', space=vmem, size = 0x20000, scoped, tag = 'input window, operand 4']
    #allocation11 [shape = 's32[2]{0}', space=sflag, size = 0x8, scoped, tag = 'scoped memory for tpu_custom_call.1']
    #allocation12 [shape = 'u8[65536]{0}', space=vmem, size = 0x10000, scoped, tag = 'input window, operand 6, single buffered']
    #allocation13 [shape = 'u8[65536]{0}', space=vmem, size = 0x10000, scoped, tag = 'input window, operand 8, single buffered']
    #allocation14 [shape = 's32[1]{0}', space=sflag, size = 0x4, scoped, tag = 'scoped memory for tpu_custom_call.1']
    #allocation15 [shape = 'u8[4096]{0}', space=vmem, size = 0x1000, scoped, tag = 'output window, operand 0, single buffered']
    %15 = vsyncpa [#allocation8], 0
    %16 = vsyncpa [#allocation11], 0
    %s17 = scalar_lea.sflag [#allocation11], 1
    %18 = vsyncpa %s17, 0
    %19 = vsyncpa [#allocation14], 0
    %20 = vsyncpa [#allocation9], 0
    loop: start=0, step=1, limit=6
    $region2: #{tpu_custom_call.1} parent=1 // loop_pre_header
      _
    $region3: #{tpu_custom_call.1} parent=1 // loop_header
      %s22 = sphi 0, %s26
      %p23 = scmp.ge.s32.totalorder %s22, 6
      %s29 = sphi 0, %s41
      %s30 = sphi 0, %s37
      %s31 = sphi 0, %s29
      %s32 = sphi 0, %s30
      %s33 = sphi 0, %s31
      %s34 = sphi 0, %s32
      %s44 = sphi 0, %s46
      %s47 = sphi 0, %s44
      %s48 = sphi 0, %s47
      %s64 = sphi 0, %s48
      %s70 = sphi 0, %s72
      %s73 = sphi 0, %s70
      %s74 = sphi 0, %s73
      %s90 = sphi 0, %s74
      %s96 = sphi 0, %s98
      %s99 = sphi 0, %s96
      %s100 = sphi 0, %s99
      %s116 = sphi 0, %s100
      %s122 = sphi 0, %s124
      %s125 = sphi 0, %s122
      %s126 = sphi 0, %s125
      %s142 = sphi 0, %s126
      %s148 = sphi 0, %s150
      %s151 = sphi 0, %s148
      %s152 = sphi 0, %s151
      %s168 = sphi 0, %s152
      %s172 = sphi 0, %s172
      %s174 = sphi 0, %s172
      %s175 = sphi 0, %s174
      %s189 = sphi 0, %s175
      %s193 = sphi 0, %s193
      %s195 = sphi 0, %s193
      %s196 = sphi 0, %s195
      %s210 = sphi 0, %s196
      %s214 = sphi 0, %s214
      %s216 = sphi 0, %s214
      %s217 = sphi 0, %s216
      %s231 = sphi 0, %s217
      %s235 = sphi 0, %s235
      %s237 = sphi 0, %s235
      %s238 = sphi 0, %s237
      %s252 = sphi 0, %s238
      %s256 = sphi 0, %s256
      %s258 = sphi 0, %s256
      %s259 = sphi 0, %s258
      %s273 = sphi 0, %s259
    $region4: #{tpu_custom_call.1} parent=1 // loop_header_branch
      %25 = sbr.rel (%p23) target = $region8
    $region5: #{tpu_custom_call.1} parent=1 // loop_body
      %s27 = ssub.s32 %s22, 1
      %s28 = ssub.s32 %s22, 2
      %s35 = sadd.s32 1, %s30
      %p36 = scmp.ge.s32.totalorder %s35, 1
      %s37 = scalar_select %p36, 0, %s35
      %s38 = sadd.s32 1, %s29
      %s39 = scalar_select %p36, %s38, %s29
      %p40 = scmp.ge.s32.totalorder %s39, 4
      %s41 = scalar_select %p40, 0, %s39
      %s42 = ssub.s32 %s30, %s37
      %p43 = scmp.eq.s32.totalorder %s42, 0
      %s45 = sadd.s32 %s44, 1
      %s46 = scalar_select %p43, %s44, %s45
      %p49 = pneg %p43
      %p50 = scmp.eq.s32.totalorder %s22, 3
      %p51 = por %p49, %p50
      %p52 = scmp.ne.s32.totalorder %s44, %s47
      %p53 = scmp.eq.s32.totalorder %s22, 0
      %p54 = por %p52, %p53
      %p55 = scmp.ne.s32.totalorder %s44, %s47
      %p56 = scmp.eq.s32.totalorder %s27, 3
      %p57 = por %p55, %p56
      %p58 = scmp.ne.s32.totalorder %s47, %s48
      %p59 = scmp.eq.s32.totalorder %s27, 0
      %p60 = por %p58, %p59
      %p61 = scmp.ne.s32.totalorder %s47, %s48
      %p62 = scmp.eq.s32.totalorder %s28, 3
      %p63 = por %p61, %p62
      %p65 = scmp.ne.s32.totalorder %s48, %s64
      %p66 = scmp.eq.s32.totalorder %s28, 0
      %p67 = por %p65, %p66
      %s68 = ssub.s32 %s30, %s37
      %p69 = scmp.eq.s32.totalorder %s68, 0
      %s71 = sadd.s32 %s70, 1
      %s72 = scalar_select %p69, %s70, %s71
      %p75 = pneg %p69
      %p76 = scmp.eq.s32.totalorder %s22, 3
      %p77 = por %p75, %p76
      %p78 = scmp.ne.s32.totalorder %s70, %s73
      %p79 = scmp.eq.s32.totalorder %s22, 0
      %p80 = por %p78, %p79
      %p81 = scmp.ne.s32.totalorder %s70, %s73
      %p82 = scmp.eq.s32.totalorder %s27, 3
      %p83 = por %p81, %p82
      %p84 = scmp.ne.s32.totalorder %s73, %s74
      %p85 = scmp.eq.s32.totalorder %s27, 0
      %p86 = por %p84, %p85
      %p87 = scmp.ne.s32.totalorder %s73, %s74
      %p88 = scmp.eq.s32.totalorder %s28, 3
      %p89 = por %p87, %p88
      %p91 = scmp.ne.s32.totalorder %s74, %s90
      %p92 = scmp.eq.s32.totalorder %s28, 0
      %p93 = por %p91, %p92
      %s94 = ssub.s32 %s30, %s37
      %p95 = scmp.eq.s32.totalorder %s94, 0
      %s97 = sadd.s32 %s96, 1
      %s98 = scalar_select %p95, %s96, %s97
      %p101 = pneg %p95
      %p102 = scmp.eq.s32.totalorder %s22, 3
      %p103 = por %p101, %p102
      %p104 = scmp.ne.s32.totalorder %s96, %s99
      %p105 = scmp.eq.s32.totalorder %s22, 0
      %p106 = por %p104, %p105
      %p107 = scmp.ne.s32.totalorder %s96, %s99
      %p108 = scmp.eq.s32.totalorder %s27, 3
      %p109 = por %p107, %p108
      %p110 = scmp.ne.s32.totalorder %s99, %s100
      %p111 = scmp.eq.s32.totalorder %s27, 0
      %p112 = por %p110, %p111
      %p113 = scmp.ne.s32.totalorder %s99, %s100
      %p114 = scmp.eq.s32.totalorder %s28, 3
      %p115 = por %p113, %p114
      %p117 = scmp.ne.s32.totalorder %s100, %s116
      %p118 = scmp.eq.s32.totalorder %s28, 0
      %p119 = por %p117, %p118
      %s120 = ssub.s32 %s29, %s41
      %p121 = scmp.eq.s32.totalorder %s120, 0
      %s123 = sadd.s32 %s122, 1
      %s124 = scalar_select %p121, %s122, %s123
      %p127 = pneg %p121
      %p128 = scmp.eq.s32.totalorder %s22, 3
      %p129 = por %p127, %p128
      %p130 = scmp.ne.s32.totalorder %s122, %s125
      %p131 = scmp.eq.s32.totalorder %s22, 0
      %p132 = por %p130, %p131
      %p133 = scmp.ne.s32.totalorder %s122, %s125
      %p134 = scmp.eq.s32.totalorder %s27, 3
      %p135 = por %p133, %p134
      %p136 = scmp.ne.s32.totalorder %s125, %s126
      %p137 = scmp.eq.s32.totalorder %s27, 0
      %p138 = por %p136, %p137
      %p139 = scmp.ne.s32.totalorder %s125, %s126
      %p140 = scmp.eq.s32.totalorder %s28, 3
      %p141 = por %p139, %p140
      %p143 = scmp.ne.s32.totalorder %s126, %s142
      %p144 = scmp.eq.s32.totalorder %s28, 0
      %p145 = por %p143, %p144
      %s146 = ssub.s32 %s29, %s41
      %p147 = scmp.eq.s32.totalorder %s146, 0
      %s149 = sadd.s32 %s148, 1
      %s150 = scalar_select %p147, %s148, %s149
      %p153 = pneg %p147
      %p154 = scmp.eq.s32.totalorder %s22, 3
      %p155 = por %p153, %p154
      %p156 = scmp.ne.s32.totalorder %s148, %s151
      %p157 = scmp.eq.s32.totalorder %s22, 0
      %p158 = por %p156, %p157
      %p159 = scmp.ne.s32.totalorder %s148, %s151
      %p160 = scmp.eq.s32.totalorder %s27, 3
      %p161 = por %p159, %p160
      %p162 = scmp.ne.s32.totalorder %s151, %s152
      %p163 = scmp.eq.s32.totalorder %s27, 0
      %p164 = por %p162, %p163
      %p165 = scmp.ne.s32.totalorder %s151, %s152
      %p166 = scmp.eq.s32.totalorder %s28, 3
      %p167 = por %p165, %p166
      %p169 = scmp.ne.s32.totalorder %s152, %s168
      %p170 = scmp.eq.s32.totalorder %s28, 0
      %p171 = por %p169, %p170
      %s173 = sadd.s32 %s172, 1
      %p176 = scmp.eq.s32.totalorder %s22, 3
      %p177 = scmp.ne.s32.totalorder %s172, %s174
      %p178 = scmp.eq.s32.totalorder %s22, 0
      %p179 = por %p177, %p178
      %p180 = scmp.ne.s32.totalorder %s172, %s174
      %p181 = scmp.eq.s32.totalorder %s27, 3
      %p182 = por %p180, %p181
      %p183 = scmp.ne.s32.totalorder %s174, %s175
      %p184 = scmp.eq.s32.totalorder %s27, 0
      %p185 = por %p183, %p184
      %p186 = scmp.ne.s32.totalorder %s174, %s175
      %p187 = scmp.eq.s32.totalorder %s28, 3
      %p188 = por %p186, %p187
      %p190 = scmp.ne.s32.totalorder %s175, %s189
      %p191 = scmp.eq.s32.totalorder %s28, 0
      %p192 = por %p190, %p191
      %s194 = sadd.s32 %s193, 1
      %p197 = scmp.eq.s32.totalorder %s22, 3
      %p198 = scmp.ne.s32.totalorder %s193, %s195
      %p199 = scmp.eq.s32.totalorder %s22, 0
      %p200 = por %p198, %p199
      %p201 = scmp.ne.s32.totalorder %s193, %s195
      %p202 = scmp.eq.s32.totalorder %s27, 3
      %p203 = por %p201, %p202
      %p204 = scmp.ne.s32.totalorder %s195, %s196
      %p205 = scmp.eq.s32.totalorder %s27, 0
      %p206 = por %p204, %p205
      %p207 = scmp.ne.s32.totalorder %s195, %s196
      %p208 = scmp.eq.s32.totalorder %s28, 3
      %p209 = por %p207, %p208
      %p211 = scmp.ne.s32.totalorder %s196, %s210
      %p212 = scmp.eq.s32.totalorder %s28, 0
      %p213 = por %p211, %p212
      %s215 = sadd.s32 %s214, 1
      %p218 = scmp.eq.s32.totalorder %s22, 3
      %p219 = scmp.ne.s32.totalorder %s214, %s216
      %p220 = scmp.eq.s32.totalorder %s22, 0
      %p221 = por %p219, %p220
      %p222 = scmp.ne.s32.totalorder %s214, %s216
      %p223 = scmp.eq.s32.totalorder %s27, 3
      %p224 = por %p222, %p223
      %p225 = scmp.ne.s32.totalorder %s216, %s217
      %p226 = scmp.eq.s32.totalorder %s27, 0
      %p227 = por %p225, %p226
      %p228 = scmp.ne.s32.totalorder %s216, %s217
      %p229 = scmp.eq.s32.totalorder %s28, 3
      %p230 = por %p228, %p229
      %p232 = scmp.ne.s32.totalorder %s217, %s231
      %p233 = scmp.eq.s32.totalorder %s28, 0
      %p234 = por %p232, %p233
      %s236 = sadd.s32 %s235, 1
      %p239 = scmp.eq.s32.totalorder %s22, 3
      %p240 = scmp.ne.s32.totalorder %s235, %s237
      %p241 = scmp.eq.s32.totalorder %s22, 0
      %p242 = por %p240, %p241
      %p243 = scmp.ne.s32.totalorder %s235, %s237
      %p244 = scmp.eq.s32.totalorder %s27, 3
      %p245 = por %p243, %p244
      %p246 = scmp.ne.s32.totalorder %s237, %s238
      %p247 = scmp.eq.s32.totalorder %s27, 0
      %p248 = por %p246, %p247
      %p249 = scmp.ne.s32.totalorder %s237, %s238
      %p250 = scmp.eq.s32.totalorder %s28, 3
      %p251 = por %p249, %p250
      %p253 = scmp.ne.s32.totalorder %s238, %s252
      %p254 = scmp.eq.s32.totalorder %s28, 0
      %p255 = por %p253, %p254
      %s257 = sadd.s32 %s256, 1
      %p260 = scmp.eq.s32.totalorder %s22, 3
      %p261 = scmp.ne.s32.totalorder %s256, %s258
      %p262 = scmp.eq.s32.totalorder %s22, 0
      %p263 = por %p261, %p262
      %p264 = scmp.ne.s32.totalorder %s256, %s258
      %p265 = scmp.eq.s32.totalorder %s27, 3
      %p266 = por %p264, %p265
      %p267 = scmp.ne.s32.totalorder %s258, %s259
      %p268 = scmp.eq.s32.totalorder %s27, 0
      %p269 = por %p267, %p268
      %p270 = scmp.ne.s32.totalorder %s258, %s259
      %p271 = scmp.eq.s32.totalorder %s28, 3
      %p272 = por %p270, %p271
      %p274 = scmp.ne.s32.totalorder %s259, %s273
      %p275 = scmp.eq.s32.totalorder %s28, 0
      %p276 = por %p274, %p275
      %p277 = scmp.le.s32.totalorder 1, %s22
      %p278 = scmp.lt.s32.totalorder %s22, 5
      %p279 = pnand %p277, %p278
      %p280 = pneg %p279
      // Predicated region
      $region9: #{tpu_custom_call.1} parent=5 // pred_check
        _
      $region10: #{tpu_custom_call.1} parent=5 // pred_check_branch
        %282 = sbr.rel (%p279) target = $region12
      $region11: #{tpu_custom_call.1} parent=5 // pred_region
        %s283 = ssub.s32 %s22, 1
        // Predicated region
        $region13: #{tpu_custom_call.1} parent=11 // pred_check
          %p284 = pneg %p60
        $region14: #{tpu_custom_call.1} parent=11 // pred_check_branch
          %286 = sbr.rel (%p284) target = $region16
        $region15: #{tpu_custom_call.1} parent=11 // pred_region
          %s287 = smul.u32 8, %s32
          %p288 = scmp.lt.s32.totalorder %s287, 7
          %s289 = scalar_select %p288, %s287, 7
          %s290 = smul.addr %s289, 2
          %s291 = smul.addr %s290, 8
          %s292 = scalar_lea.vmem %s1, %s291
          %s293 = smul.u32 8, %s32
        $region16: #{tpu_custom_call.1} parent=11 // pred_fallthru
          _
        // Predicated region
        $region17: #{tpu_custom_call.1} parent=11 // pred_check
          %p294 = pneg %p86
        $region18: #{tpu_custom_call.1} parent=11 // pred_check_branch
          %296 = sbr.rel (%p294) target = $region20
        $region19: #{tpu_custom_call.1} parent=11 // pred_region
          %s297 = smul.u32 32, %s32
          %p298 = scmp.lt.s32.totalorder %s297, 31
          %s299 = scalar_select %p298, %s297, 31
          %s300 = smul.addr %s299, 8
          %s301 = scalar_lea.vmem %s2, %s300
          %s302 = smul.u32 32, %s32
        $region20: #{tpu_custom_call.1} parent=11 // pred_fallthru
          _
        // Predicated region
        $region21: #{tpu_custom_call.1} parent=11 // pred_check
          %p303 = pneg %p112
        $region22: #{tpu_custom_call.1} parent=11 // pred_check_branch
          %305 = sbr.rel (%p303) target = $region24
        $region23: #{tpu_custom_call.1} parent=11 // pred_region
          %s306 = smul.u32 2, %s32
          %s308 = ssub.s32 256, 256
          %309 = vsyncadd [#allocation8], %s308
          %s310 = smul.addr %s306, 128
          %s311 = scalar_lea.hbm %s3, %s310
          %s313 = sshll.u32 [#allocation7], 4
          %s314 = int_to_ptr.vmem [resolvable:$true] %s313
          %316 = dma.hbm_to_vmem [thread:$0]  %s311, 256, %s314, [#allocation8]
        $region24: #{tpu_custom_call.1} parent=11 // pred_fallthru
          _
        // Predicated region
        $region25: #{tpu_custom_call.1} parent=11 // pred_check
          %p317 = pneg %p185
        $region26: #{tpu_custom_call.1} parent=11 // pred_check_branch
          %319 = sbr.rel (%p317) target = $region28
        $region27: #{tpu_custom_call.1} parent=11 // pred_region
          %s321 = ssub.s32 2048, 2048
          %322 = vsyncadd [#allocation11], %s321
          %s323 = sshll.u32 [#allocation12], 4
          %s324 = int_to_ptr.vmem [resolvable:$true] %s323
          %329 = dma.hbm_to_vmem [thread:$0]  %s6, 2048, %s324, [#allocation11], 128, 128, 8
        $region28: #{tpu_custom_call.1} parent=11 // pred_fallthru
          _
        // Predicated region
        $region29: #{tpu_custom_call.1} parent=11 // pred_check
          %p330 = pneg %p206
        $region30: #{tpu_custom_call.1} parent=11 // pred_check_branch
          %332 = sbr.rel (%p330) target = $region32
        $region31: #{tpu_custom_call.1} parent=11 // pred_region
          _
        $region32: #{tpu_custom_call.1} parent=11 // pred_fallthru
          _
        // Predicated region
        $region33: #{tpu_custom_call.1} parent=11 // pred_check
          %p333 = pneg %p227
        $region34: #{tpu_custom_call.1} parent=11 // pred_check_branch
          %335 = sbr.rel (%p333) target = $region36
        $region35: #{tpu_custom_call.1} parent=11 // pred_region
          %s337 = ssub.s32 2048, 2048
          %338 = vsyncadd [#allocation14], %s337
          %s339 = sshll.u32 [#allocation13], 4
          %s340 = int_to_ptr.vmem [resolvable:$true] %s339
          %345 = dma.hbm_to_vmem [thread:$0]  %s8, 2048, %s340, [#allocation14], 128, 128, 8
        $region36: #{tpu_custom_call.1} parent=11 // pred_fallthru
          _
        // Predicated region
        $region37: #{tpu_custom_call.1} parent=11 // pred_check
          %p346 = pneg %p248
        $region38: #{tpu_custom_call.1} parent=11 // pred_check_branch
          %348 = sbr.rel (%p346) target = $region40
        $region39: #{tpu_custom_call.1} parent=11 // pred_region
          _
        $region40: #{tpu_custom_call.1} parent=11 // pred_fallthru
          _
      $region12: #{tpu_custom_call.1} parent=5 // pred_fallthru
        _
      %p349 = scmp.lt.s32.totalorder %s22, 4
      // Predicated region
      $region41: #{tpu_custom_call.1} parent=5 // pred_check
        %p350 = pneg %p349
      $region42: #{tpu_custom_call.1} parent=5 // pred_check_branch
        %352 = sbr.rel (%p350) target = $region44
      $region43: #{tpu_custom_call.1} parent=5 // pred_region
        // Predicated region
        $region45: #{tpu_custom_call.1} parent=43 // pred_check
          %p353 = pneg %p132
        $region46: #{tpu_custom_call.1} parent=43 // pred_check_branch
          %355 = sbr.rel (%p353) target = $region48
        $region47: #{tpu_custom_call.1} parent=43 // pred_region
          %s356 = sand.u32 %s22, 1
          %s357 = scalar_lea.sflag [#allocation11], %s356
          %s358 = sand.u32 %s122, 1
          %s359 = smul.addr %s358, 128
          %s360 = scalar_lea.vmem [#allocation10], %s359
          %s362 = ssub.s32 2048, 2048
          %363 = vsyncadd %s357, %s362
          %s364 = smul.addr %s29, 32
          %s365 = smul.addr %s364, 64
          %s366 = scalar_lea.hbm %s4, %s365
          %s367 = sshll.u32 %s360, 4
          %s368 = int_to_ptr.vmem [resolvable:$true] %s367
          %373 = dma.hbm_to_vmem [thread:$0]  %s366, 2048, %s368, %s357, 64, 64, 4
        $region48: #{tpu_custom_call.1} parent=43 // pred_fallthru
          _
        // Predicated region
        $region49: #{tpu_custom_call.1} parent=43 // pred_check
          %p374 = pneg %p158
        $region50: #{tpu_custom_call.1} parent=43 // pred_check_branch
          %376 = sbr.rel (%p374) target = $region52
        $region51: #{tpu_custom_call.1} parent=43 // pred_region
          %p377 = scmp.lt.s32.totalorder %s29, 3
          %s378 = scalar_select %p377, %s29, 3
          %s379 = scalar_lea.vmem %s5, %s378
        $region52: #{tpu_custom_call.1} parent=43 // pred_fallthru
          _
      $region44: #{tpu_custom_call.1} parent=5 // pred_fallthru
        _
      %p380 = scmp.le.s32.totalorder 1, %s22
      %p381 = scmp.lt.s32.totalorder %s22, 5
      %p382 = pnand %p380, %p381
      %p383 = pneg %p382
      // Predicated region
      $region53: #{tpu_custom_call.1} parent=5 // pred_check
        _
      $region54: #{tpu_custom_call.1} parent=5 // pred_check_branch
        %385 = sbr.rel (%p382) target = $region56
      $region55: #{tpu_custom_call.1} parent=5 // pred_region
        %s386 = ssub.s32 %s22, 1
        // Predicated region
        $region57: #{tpu_custom_call.1} parent=55 // pred_check
          %p387 = pneg %p112
        $region58: #{tpu_custom_call.1} parent=55 // pred_check_branch
          %389 = sbr.rel (%p387) target = $region60
        $region59: #{tpu_custom_call.1} parent=55 // pred_region
          %390 = dma.done [#allocation8], 256
        $region60: #{tpu_custom_call.1} parent=55 // pred_fallthru
          _
        %s391 = sand.u32 %s27, 1
        %s392 = scalar_lea.sflag [#allocation11], %s391
        %s393 = sand.u32 %s125, 1
        %s394 = smul.addr %s393, 128
        %s395 = scalar_lea.vmem [#allocation10], %s394
        // Predicated region
        $region61: #{tpu_custom_call.1} parent=55 // pred_check
          %p396 = pneg %p138
        $region62: #{tpu_custom_call.1} parent=55 // pred_check_branch
          %398 = sbr.rel (%p396) target = $region64
        $region63: #{tpu_custom_call.1} parent=55 // pred_region
          %399 = dma.done %s392, 2048
        $region64: #{tpu_custom_call.1} parent=55 // pred_fallthru
          _
        // Predicated region
        $region65: #{tpu_custom_call.1} parent=55 // pred_check
          %p400 = pneg %p185
        $region66: #{tpu_custom_call.1} parent=55 // pred_check_branch
          %402 = sbr.rel (%p400) target = $region68
        $region67: #{tpu_custom_call.1} parent=55 // pred_region
          %403 = dma.done [#allocation11], 2048
        $region68: #{tpu_custom_call.1} parent=55 // pred_fallthru
          _
        // Predicated region
        $region69: #{tpu_custom_call.1} parent=55 // pred_check
          %p404 = pneg %p227
        $region70: #{tpu_custom_call.1} parent=55 // pred_check_branch
          %406 = sbr.rel (%p404) target = $region72
        $region71: #{tpu_custom_call.1} parent=55 // pred_region
          %407 = dma.done [#allocation14], 2048
        $region72: #{tpu_custom_call.1} parent=55 // pred_fallthru
          _
        %s408 = smul.u32 8, %s32
        %p409 = scmp.lt.s32.totalorder %s408, 7
        %s410 = scalar_select %p409, %s408, 7
        %s411 = smul.addr %s410, 2
        %s412 = smul.addr %s411, 8
        %s413 = scalar_lea.vmem %s1, %s412
        %p414 = pneg %p60
        %p415 = pneg %p57
        %s416 = smul.u32 32, %s32
        %p417 = scmp.lt.s32.totalorder %s416, 31
        %s418 = scalar_select %p417, %s416, 31
        %s419 = smul.addr %s418, 8
        %s420 = scalar_lea.vmem %s2, %s419
        %p421 = pneg %p86
        %p422 = pneg %p83
        %p423 = pneg %p112
        %p424 = pneg %p109
        %s425 = sand.u32 %s27, 1
        %s426 = scalar_lea.sflag [#allocation11], %s425
        %s427 = sand.u32 %s125, 1
        %s428 = smul.addr %s427, 128
        %s429 = scalar_lea.vmem [#allocation10], %s428
        %p430 = pneg %p138
        %p431 = pneg %p135
        %p432 = scmp.lt.s32.totalorder %s31, 3
        %s433 = scalar_select %p432, %s31, 3
        %s434 = scalar_lea.vmem %s5, %s433
        %p435 = pneg %p164
        %p436 = pneg %p161
        %p437 = pneg %p185
        %p438 = pneg %p182
        %p439 = pneg %p206
        %p440 = pneg %p203
        %p441 = pneg %p227
        %p442 = pneg %p224
        %p443 = pneg %p248
        %p444 = pneg %p245
        %p445 = pneg %p269
        %p446 = pneg %p266
        %s447 = smul.u32 8, %s32
        %p448 = scmp.lt.s32.totalorder %s447, 7
        %s449 = scalar_select %p448, %s447, 7
        %s450 = smul.addr %s449, 2
        %s451 = smul.addr %s450, 8
        %s452 = scalar_lea.vmem %s1, %s451
        %s453 = smul.u32 8, %s32
        %s454 = smul.u32 32, %s32
        %p455 = scmp.lt.s32.totalorder %s454, 31
        %s456 = scalar_select %p455, %s454, 31
        %s457 = smul.addr %s456, 8
        %s458 = scalar_lea.vmem %s2, %s457
        %s459 = smul.u32 32, %s32
        %s460 = smul.u32 2, %s32
        %p461 = scmp.lt.s32.totalorder %s31, 3
        %s462 = scalar_select %p461, %s31, 3
        %s463 = scalar_lea.vmem %s5, %s462
        %s465 = smul.u32 %s32, 256
        %p466 = scmp.eq.s32.totalorder %s31, 0
        %p467 = scmp.eq.s32.totalorder %s32, 0
        %p468 = pnand %p466, %p467
        %p469 = pneg %p468
        // Predicated region
        $region73: #{tpu_custom_call.1} parent=55 // pred_check
          _
        $region74: #{tpu_custom_call.1} parent=55 // pred_check_branch
          %471 = sbr.rel (%p468) target = $region76
        $region75: #{tpu_custom_call.1} parent=55 // pred_region
          %p473 = scmp.lt.u32.totalorder 128, 8
          %p474 = pneg %p473
          // Predicated region
          $region77: #{tpu_custom_call.1} parent=75 // pred_check
            _
          $region78: #{tpu_custom_call.1} parent=75 // pred_check_branch
            %476 = sbr.rel (%p473) target = $region80
          $region79: #{tpu_custom_call.1} parent=75 // pred_region
            %s491 = sand.u32 128, 7
            %p492 = scmp.eq.s32.totalorder %s491, 0
            // Predicated region
            $region92: #{tpu_custom_call.1} parent=79 // pred_check
              %p493 = pneg %p492
            $region93: #{tpu_custom_call.1} parent=79 // pred_check_branch
              %495 = sbr.rel (%p493) target = $region95
            $region94: #{tpu_custom_call.1} parent=79 // pred_region
              loop: start=0, step=1, limit=1
              $region96: #{tpu_custom_call.1} parent=94 // loop_pre_header
                _
              $region97: #{tpu_custom_call.1} parent=94 // loop_header
                %s497 = sphi 0, %s501
                %p498 = scmp.ge.s32.totalorder %s497, 1
                %s502 = sphi %s0, %s0
                %s503 = sphi [#allocation2], [#allocation2]
              $region98: #{tpu_custom_call.1} parent=94 // loop_header_branch
                %500 = sbr.rel (%p498) target = $region102
              $region99: #{tpu_custom_call.1} parent=94 // loop_body
                %v504 = vld [vmem:[%s502] sm:$0xff]
                %505 = vst [vmem:[%s503] sm:$0xff] %v504
                %v506 = vld [vmem:[%s502 + $0x8] sm:$0xff]
                %507 = vst [vmem:[%s503 + $0x8] sm:$0xff] %v506
                %v508 = vld [vmem:[%s502 + $0x10] sm:$0xff]
                %509 = vst [vmem:[%s503 + $0x10] sm:$0xff] %v508
                %v510 = vld [vmem:[%s502 + $0x18] sm:$0xff]
                %511 = vst [vmem:[%s503 + $0x18] sm:$0xff] %v510
                %v512 = vld [vmem:[%s502 + $0x20] sm:$0xff]
                %513 = vst [vmem:[%s503 + $0x20] sm:$0xff] %v512
                %v514 = vld [vmem:[%s502 + $0x28] sm:$0xff]
                %515 = vst [vmem:[%s503 + $0x28] sm:$0xff] %v514
                %v516 = vld [vmem:[%s502 + $0x30] sm:$0xff]
                %517 = vst [vmem:[%s503 + $0x30] sm:$0xff] %v516
                %v518 = vld [vmem:[%s502 + $0x38] sm:$0xff]
                %519 = vst [vmem:[%s503 + $0x38] sm:$0xff] %v518
                %v520 = vld [vmem:[%s502 + $0x40] sm:$0xff]
                %521 = vst [vmem:[%s503 + $0x40] sm:$0xff] %v520
                %v522 = vld [vmem:[%s502 + $0x48] sm:$0xff]
                %523 = vst [vmem:[%s503 + $0x48] sm:$0xff] %v522
                %v524 = vld [vmem:[%s502 + $0x50] sm:$0xff]
                %525 = vst [vmem:[%s503 + $0x50] sm:$0xff] %v524
                %v526 = vld [vmem:[%s502 + $0x58] sm:$0xff]
                %527 = vst [vmem:[%s503 + $0x58] sm:$0xff] %v526
                %v528 = vld [vmem:[%s502 + $0x60] sm:$0xff]
                %529 = vst [vmem:[%s503 + $0x60] sm:$0xff] %v528
                %v530 = vld [vmem:[%s502 + $0x68] sm:$0xff]
                %531 = vst [vmem:[%s503 + $0x68] sm:$0xff] %v530
                %v532 = vld [vmem:[%s502 + $0x70] sm:$0xff]
                %533 = vst [vmem:[%s503 + $0x70] sm:$0xff] %v532
                %v534 = vld [vmem:[%s502 + $0x78] sm:$0xff]
                %535 = vst [vmem:[%s503 + $0x78] sm:$0xff] %v534
              $region100: #{tpu_custom_call.1} parent=94 // loop_footer
                %s501 = sadd.s32 1, %s497
              $region101: #{tpu_custom_call.1} parent=94 // loop_footer_branch
                %496 = sbr.rel target = $region97
              $region102: #{tpu_custom_call.1} parent=94 // loop_exit
                _
            $region95: #{tpu_custom_call.1} parent=79 // pred_fallthru
              _
            %p536 = pneg %p492
            // Predicated region
            $region103: #{tpu_custom_call.1} parent=79 // pred_check
              _
            $region104: #{tpu_custom_call.1} parent=79 // pred_check_branch
              %538 = sbr.rel (%p492) target = $region106
            $region105: #{tpu_custom_call.1} parent=79 // pred_region
              %s539 = sand.u32 128, 7
            $region106: #{tpu_custom_call.1} parent=79 // pred_fallthru
              _
          $region80: #{tpu_custom_call.1} parent=75 // pred_fallthru
            _
          // Predicated region
          $region81: #{tpu_custom_call.1} parent=75 // pred_check
            %p477 = pneg %p473
          $region82: #{tpu_custom_call.1} parent=75 // pred_check_branch
            %479 = sbr.rel (%p477) target = $region84
          $region83: #{tpu_custom_call.1} parent=75 // pred_region
            %s480 = sshllo.u32 0, 128
            loop: start=0, step=1, limit=1
            $region85: #{tpu_custom_call.1} parent=83 // loop_pre_header
              _
            $region86: #{tpu_custom_call.1} parent=83 // loop_header
              %s482 = sphi 0, %s486
              %p483 = scmp.ge.s32.totalorder %s482, 1
              %s487 = sphi %s0, %s0
              %s488 = sphi [#allocation2], [#allocation2]
            $region87: #{tpu_custom_call.1} parent=83 // loop_header_branch
              %485 = sbr.rel (%p483) target = $region91
            $region88: #{tpu_custom_call.1} parent=83 // loop_body
              %v489 = vld [vmem:[%s487] sm:%s480]
              %490 = vst [vmem:[%s488] sm:%s480] %v489
            $region89: #{tpu_custom_call.1} parent=83 // loop_footer
              %s486 = sadd.s32 1, %s482
            $region90: #{tpu_custom_call.1} parent=83 // loop_footer_branch
              %481 = sbr.rel target = $region86
            $region91: #{tpu_custom_call.1} parent=83 // loop_exit
              _
          $region84: #{tpu_custom_call.1} parent=75 // pred_fallthru
            _
          // Predicated region
          $region107: #{tpu_custom_call.1} parent=75 // pred_check
            _
          $region108: #{tpu_custom_call.1} parent=75 // pred_check_branch
            %542 = sbr.rel (0) target = $region110
          $region109: #{tpu_custom_call.1} parent=75 // pred_region
            %543 = vsyncadd [#allocation6], 2048
          $region110: #{tpu_custom_call.1} parent=75 // pred_fallthru
            _
          %s544 = smul.u32 4, 32
          %s545 = smul.u32 %s544, 1
          %s546 = sshll.u32 %s545, 4
          %547 = dma.done [#allocation6], %s546
        $region76: #{tpu_custom_call.1} parent=55 // pred_fallthru
          _
        %v548 = vld [vmem:[%s452] sm:$0xff]
        %v549 = vld [vmem:[%s452 + $0x8] sm:$0xff]
        %v550 = vld [vmem:[%s452 + $0x10] sm:$0xff]
        %v551 = vld [vmem:[%s452 + $0x18] sm:$0xff]
        %v552 = vld [vmem:[%s452 + $0x20] sm:$0xff]
        %v553 = vld [vmem:[%s452 + $0x28] sm:$0xff]
        %v554 = vld [vmem:[%s452 + $0x30] sm:$0xff]
        %v555 = vld [vmem:[%s452 + $0x38] sm:$0xff]
        %v556 = vld [vmem:[%s452 + $0x40] sm:$0xff]
        %v557 = vld [vmem:[%s452 + $0x48] sm:$0xff]
        %v558 = vld [vmem:[%s452 + $0x50] sm:$0xff]
        %v559 = vld [vmem:[%s452 + $0x58] sm:$0xff]
        %v560 = vld [vmem:[%s452 + $0x60] sm:$0xff]
        %v561 = vld [vmem:[%s452 + $0x68] sm:$0xff]
        %v562 = vld [vmem:[%s452 + $0x70] sm:$0xff]
        %v563 = vld [vmem:[%s452 + $0x78] sm:$0xff]
        %v564 = vunpack.c.l.s8.bf16 %v548
        %v565 = vunpack.c.l.s8.bf16 %v549
        %v566 = vunpack.c.h.s8.bf16 %v548
        %v567 = vunpack.c.h.s8.bf16 %v549
        %v568 = vunpack.c.l.s8.bf16 %v550
        %v569 = vunpack.c.l.s8.bf16 %v551
        %v570 = vunpack.c.h.s8.bf16 %v550
        %v571 = vunpack.c.h.s8.bf16 %v551
        %v572 = vunpack.c.l.s8.bf16 %v552
        %v573 = vunpack.c.l.s8.bf16 %v553
        %v574 = vunpack.c.h.s8.bf16 %v552
        %v575 = vunpack.c.h.s8.bf16 %v553
        %v576 = vunpack.c.l.s8.bf16 %v554
        %v577 = vunpack.c.l.s8.bf16 %v555
        %v578 = vunpack.c.h.s8.bf16 %v554
        %v579 = vunpack.c.h.s8.bf16 %v555
        %v580 = vunpack.c.l.s8.bf16 %v556
        %v581 = vunpack.c.l.s8.bf16 %v557
        %v582 = vunpack.c.h.s8.bf16 %v556
        %v583 = vunpack.c.h.s8.bf16 %v557
        %v584 = vunpack.c.l.s8.bf16 %v558
        %v585 = vunpack.c.l.s8.bf16 %v559
        %v586 = vunpack.c.h.s8.bf16 %v558
        %v587 = vunpack.c.h.s8.bf16 %v559
        %v588 = vunpack.c.l.s8.bf16 %v560
        %v589 = vunpack.c.l.s8.bf16 %v561
        %v590 = vunpack.c.h.s8.bf16 %v560
        %v591 = vunpack.c.h.s8.bf16 %v561
        %v592 = vunpack.c.l.s8.bf16 %v562
        %v593 = vunpack.c.l.s8.bf16 %v563
        %v594 = vunpack.c.h.s8.bf16 %v562
        %v595 = vunpack.c.h.s8.bf16 %v563
        %v596 = vld [vmem:[#allocation2] sm:$0xff]
        %v597 = vld [vmem:[#allocation2 + $0x8] sm:$0xff]
        %v598 = vld [vmem:[#allocation2 + $0x10] sm:$0xff]
        %v599 = vld [vmem:[#allocation2 + $0x18] sm:$0xff]
        %v600 = vld [vmem:[#allocation2 + $0x20] sm:$0xff]
        %v601 = vld [vmem:[#allocation2 + $0x28] sm:$0xff]
        %v602 = vld [vmem:[#allocation2 + $0x30] sm:$0xff]
        %v603 = vld [vmem:[#allocation2 + $0x38] sm:$0xff]
        %v604 = vld [vmem:[#allocation2 + $0x40] sm:$0xff]
        %v605 = vld [vmem:[#allocation2 + $0x48] sm:$0xff]
        %v606 = vld [vmem:[#allocation2 + $0x50] sm:$0xff]
        %v607 = vld [vmem:[#allocation2 + $0x58] sm:$0xff]
        %v608 = vld [vmem:[#allocation2 + $0x60] sm:$0xff]
        %v609 = vld [vmem:[#allocation2 + $0x68] sm:$0xff]
        %v610 = vld [vmem:[#allocation2 + $0x70] sm:$0xff]
        %v611 = vld [vmem:[#allocation2 + $0x78] sm:$0xff]
        %612 = vmatprep.subr.bf16.mxu0 0
        %613 = vmatpush1.bf16.msra.mxu0 %v596
        %614 = vmatprep.subr.bf16.mxu0 0
        %615 = vmatpush1.bf16.msra.mxu0 %v597
        %616 = vmatprep.subr.bf16.mxu0 0
        %617 = vmatpush1.bf16.msra.mxu0 %v598
        %618 = vmatprep.subr.bf16.mxu0 0
        %619 = vmatpush1.bf16.msra.mxu0 %v599
        %620 = vmatprep.subr.bf16.mxu0 0
        %621 = vmatpush1.bf16.msra.mxu0 %v600
        %622 = vmatprep.subr.bf16.mxu0 0
        %623 = vmatpush1.bf16.msra.mxu0 %v601
        %624 = vmatprep.subr.bf16.mxu0 0
        %625 = vmatpush1.bf16.msra.mxu0 %v602
        %626 = vmatprep.subr.bf16.mxu0 0
        %627 = vmatpush1.bf16.msra.mxu0 %v603
        %628 = vmatprep.subr.bf16.mxu0 0
        %629 = vmatpush1.bf16.msra.mxu0 %v604
        %630 = vmatprep.subr.bf16.mxu0 0
        %631 = vmatpush1.bf16.msra.mxu0 %v605
        %632 = vmatprep.subr.bf16.mxu0 0
        %633 = vmatpush1.bf16.msra.mxu0 %v606
        %634 = vmatprep.subr.bf16.mxu0 0
        %635 = vmatpush1.bf16.msra.mxu0 %v607
        %636 = vmatprep.subr.bf16.mxu0 0
        %637 = vmatpush1.bf16.msra.mxu0 %v608
        %638 = vmatprep.subr.bf16.mxu0 0
        %639 = vmatpush1.bf16.msra.mxu0 %v609
        %640 = vmatprep.subr.bf16.mxu0 0
        %641 = vmatpush1.bf16.msra.mxu0 %v610
        %642 = vmatprep.subr.bf16.mxu0 0
        %643 = vmatpush1.bf16.msra.mxu0 %v611
        %644 = vmatprep.mubr.bf16.mxu0 %v565
        %645 = vmatmul.mubr.bf16.gmra.mrb[0].mxu0 %v564
        %v646 = vpop.f32.mrb[0].mxu0
        %v647 = vadd.f32 0.0, %v646
        %v648 = vpop.f32.mrb[0].mxu0
        %v649 = vpop.f32.mrb[0].mxu0
        %v650 = vadd.f32 0.0, %v649
        %v651 = vpop.f32.mrb[0].mxu0
        %652 = vmatprep.mubr.bf16.mxu0 %v567
        %653 = vmatmul.mubr.bf16.gmra.mrb[0].mxu0 %v566
        %v654 = vpop.f32.mrb[0].mxu0
        %v655 = vadd.f32 0.0, %v654
        %v656 = vpop.f32.mrb[0].mxu0
        %v657 = vpop.f32.mrb[0].mxu0
        %v658 = vadd.f32 0.0, %v657
        %v659 = vpop.f32.mrb[0].mxu0
        %660 = vmatprep.mubr.bf16.mxu0 %v569
        %661 = vmatmul.mubr.bf16.gmra.mrb[0].mxu0 %v568
        %v662 = vpop.f32.mrb[0].mxu0
        %v663 = vadd.f32 0.0, %v662
        %v664 = vpop.f32.mrb[0].mxu0
        %v665 = vpop.f32.mrb[0].mxu0
        %v666 = vadd.f32 0.0, %v665
        %v667 = vpop.f32.mrb[0].mxu0
        %668 = vmatprep.mubr.bf16.mxu0 %v571
        %669 = vmatmul.mubr.bf16.gmra.mrb[0].mxu0 %v570
        %v670 = vpop.f32.mrb[0].mxu0
        %v671 = vadd.f32 0.0, %v670
        %v672 = vpop.f32.mrb[0].mxu0
        %v673 = vpop.f32.mrb[0].mxu0
        %v674 = vadd.f32 0.0, %v673
        %v675 = vpop.f32.mrb[0].mxu0
        %676 = vmatprep.mubr.bf16.mxu0 %v573
        %677 = vmatmul.mubr.bf16.gmra.mrb[0].mxu0 %v572
        %v678 = vpop.f32.mrb[0].mxu0
        %v679 = vadd.f32 0.0, %v678
        %v680 = vpop.f32.mrb[0].mxu0
        %v681 = vpop.f32.mrb[0].mxu0
        %v682 = vadd.f32 0.0, %v681
        %v683 = vpop.f32.mrb[0].mxu0
        %684 = vmatprep.mubr.bf16.mxu0 %v575
        %685 = vmatmul.mubr.bf16.gmra.mrb[0].mxu0 %v574
        %v686 = vpop.f32.mrb[0].mxu0
        %v687 = vadd.f32 0.0, %v686
        %v688 = vpop.f32.mrb[0].mxu0
        %v689 = vpop.f32.mrb[0].mxu0
        %v690 = vadd.f32 0.0, %v689
        %v691 = vpop.f32.mrb[0].mxu0
        %692 = vmatprep.mubr.bf16.mxu0 %v577
        %693 = vmatmul.mubr.bf16.gmra.mrb[0].mxu0 %v576
        %v694 = vpop.f32.mrb[0].mxu0
        %v695 = vadd.f32 0.0, %v694
        %v696 = vpop.f32.mrb[0].mxu0
        %v697 = vpop.f32.mrb[0].mxu0
        %v698 = vadd.f32 0.0, %v697
        %v699 = vpop.f32.mrb[0].mxu0
        %700 = vmatprep.mubr.bf16.mxu0 %v579
        %701 = vmatmul.mubr.bf16.gmra.mrb[0].mxu0 %v578
        %v702 = vpop.f32.mrb[0].mxu0
        %v703 = vadd.f32 0.0, %v702
        %v704 = vpop.f32.mrb[0].mxu0
        %v705 = vpop.f32.mrb[0].mxu0
        %v706 = vadd.f32 0.0, %v705
        %v707 = vpop.f32.mrb[0].mxu0
        %708 = vmatprep.mubr.bf16.mxu0 %v581
        %709 = vmatmul.mubr.bf16.gmra.mrb[0].mxu0 %v580
        %v710 = vpop.f32.mrb[0].mxu0
        %v711 = vadd.f32 0.0, %v710
        %v712 = vpop.f32.mrb[0].mxu0
        %v713 = vpop.f32.mrb[0].mxu0
        %v714 = vadd.f32 0.0, %v713
        %v715 = vpop.f32.mrb[0].mxu0
        %716 = vmatprep.mubr.bf16.mxu0 %v583
        %717 = vmatmul.mubr.bf16.gmra.mrb[0].mxu0 %v582
        %v718 = vpop.f32.mrb[0].mxu0
        %v719 = vadd.f32 0.0, %v718
        %v720 = vpop.f32.mrb[0].mxu0
        %v721 = vpop.f32.mrb[0].mxu0
        %v722 = vadd.f32 0.0, %v721
        %v723 = vpop.f32.mrb[0].mxu0
        %724 = vmatprep.mubr.bf16.mxu0 %v585
        %725 = vmatmul.mubr.bf16.gmra.mrb[0].mxu0 %v584
        %v726 = vpop.f32.mrb[0].mxu0
        %v727 = vadd.f32 0.0, %v726
        %v728 = vpop.f32.mrb[0].mxu0
        %v729 = vpop.f32.mrb[0].mxu0
        %v730 = vadd.f32 0.0, %v729
        %v731 = vpop.f32.mrb[0].mxu0
        %732 = vmatprep.mubr.bf16.mxu0 %v587
        %733 = vmatmul.mubr.bf16.gmra.mrb[0].mxu0 %v586
        %v734 = vpop.f32.mrb[0].mxu0
        %v735 = vadd.f32 0.0, %v734
        %v736 = vpop.f32.mrb[0].mxu0
        %v737 = vpop.f32.mrb[0].mxu0
        %v738 = vadd.f32 0.0, %v737
        %v739 = vpop.f32.mrb[0].mxu0
        %740 = vmatprep.mubr.bf16.mxu0 %v589
        %741 = vmatmul.mubr.bf16.gmra.mrb[0].mxu0 %v588
        %v742 = vpop.f32.mrb[0].mxu0
        %v743 = vadd.f32 0.0, %v742
        %v744 = vpop.f32.mrb[0].mxu0
        %v745 = vpop.f32.mrb[0].mxu0
        %v746 = vadd.f32 0.0, %v745
        %v747 = vpop.f32.mrb[0].mxu0
        %748 = vmatprep.mubr.bf16.mxu0 %v591
        %749 = vmatmul.mubr.bf16.gmra.mrb[0].mxu0 %v590
        %v750 = vpop.f32.mrb[0].mxu0
        %v751 = vadd.f32 0.0, %v750
        %v752 = vpop.f32.mrb[0].mxu0
        %v753 = vpop.f32.mrb[0].mxu0
        %v754 = vadd.f32 0.0, %v753
        %v755 = vpop.f32.mrb[0].mxu0
        %756 = vmatprep.mubr.bf16.mxu0 %v593
        %757 = vmatmul.mubr.bf16.gmra.mrb[0].mxu0 %v592
        %v758 = vpop.f32.mrb[0].mxu0
        %v759 = vadd.f32 0.0, %v758
        %v760 = vpop.f32.mrb[0].mxu0
        %v761 = vpop.f32.mrb[0].mxu0
        %v762 = vadd.f32 0.0, %v761
        %v763 = vpop.f32.mrb[0].mxu0
        %764 = vmatprep.mubr.bf16.mxu0 %v595
        %765 = vmatmul.mubr.bf16.gmra.mrb[0].mxu0 %v594
        %v766 = vpop.f32.mrb[0].mxu0
        %v767 = vadd.f32 0.0, %v766
        %v768 = vpop.f32.mrb[0].mxu0
        %v769 = vpop.f32.mrb[0].mxu0
        %v770 = vadd.f32 0.0, %v769
        %v771 = vpop.f32.mrb[0].mxu0
        %772 = vdwg.mxu0
        %v773 = vld [vmem:[%s458] sm:$0xff]
        %v774 = vld [vmem:[%s458 + $0x8] sm:$0xff]
        %v775 = vld [vmem:[%s458 + $0x10] sm:$0xff]
        %v776 = vld [vmem:[%s458 + $0x18] sm:$0xff]
        %v777 = vld [vmem:[%s458 + $0x20] sm:$0xff]
        %v778 = vld [vmem:[%s458 + $0x28] sm:$0xff]
        %v779 = vld [vmem:[%s458 + $0x30] sm:$0xff]
        %v780 = vld [vmem:[%s458 + $0x38] sm:$0xff]
        %v781 = vld [vmem:[%s458 + $0x40] sm:$0xff]
        %v782 = vld [vmem:[%s458 + $0x48] sm:$0xff]
        %v783 = vld [vmem:[%s458 + $0x50] sm:$0xff]
        %v784 = vld [vmem:[%s458 + $0x58] sm:$0xff]
        %v785 = vld [vmem:[%s458 + $0x60] sm:$0xff]
        %v786 = vld [vmem:[%s458 + $0x68] sm:$0xff]
        %v787 = vld [vmem:[%s458 + $0x70] sm:$0xff]
        %v788 = vld [vmem:[%s458 + $0x78] sm:$0xff]
        %v789 = vld [vmem:[%s458 + $0x80] sm:$0xff]
        %v790 = vld [vmem:[%s458 + $0x88] sm:$0xff]
        %v791 = vld [vmem:[%s458 + $0x90] sm:$0xff]
        %v792 = vld [vmem:[%s458 + $0x98] sm:$0xff]
        %v793 = vld [vmem:[%s458 + $0xa0] sm:$0xff]
        %v794 = vld [vmem:[%s458 + $0xa8] sm:$0xff]
        %v795 = vld [vmem:[%s458 + $0xb0] sm:$0xff]
        %v796 = vld [vmem:[%s458 + $0xb8] sm:$0xff]
        %v797 = vld [vmem:[%s458 + $0xc0] sm:$0xff]
        %v798 = vld [vmem:[%s458 + $0xc8] sm:$0xff]
        %v799 = vld [vmem:[%s458 + $0xd0] sm:$0xff]
        %v800 = vld [vmem:[%s458 + $0xd8] sm:$0xff]
        %v801 = vld [vmem:[%s458 + $0xe0] sm:$0xff]
        %v802 = vld [vmem:[%s458 + $0xe8] sm:$0xff]
        %v803 = vld [vmem:[%s458 + $0xf0] sm:$0xff]
        %v804 = vld [vmem:[%s458 + $0xf8] sm:$0xff]
        %806 = vset.pattern.permute.xlu0 0
        %807 = vperm.xlu0 %806, %v773
        %v808 = vpop.permute.xlu0 %807
        %811 = vset.pattern.permute.xlu0 0
        %812 = vperm.xlu0 %811, %v774
        %v813 = vpop.permute.xlu0 %812
        %816 = vset.pattern.permute.xlu0 0
        %817 = vperm.xlu0 %816, %v775
        %v818 = vpop.permute.xlu0 %817
        %821 = vset.pattern.permute.xlu0 0
        %822 = vperm.xlu0 %821, %v776
        %v823 = vpop.permute.xlu0 %822
        %826 = vset.pattern.permute.xlu0 0
        %827 = vperm.xlu0 %826, %v777
        %v828 = vpop.permute.xlu0 %827
        %831 = vset.pattern.permute.xlu0 0
        %832 = vperm.xlu0 %831, %v778
        %v833 = vpop.permute.xlu0 %832
        %836 = vset.pattern.permute.xlu0 0
        %837 = vperm.xlu0 %836, %v779
        %v838 = vpop.permute.xlu0 %837
        %841 = vset.pattern.permute.xlu0 0
        %842 = vperm.xlu0 %841, %v780
        %v843 = vpop.permute.xlu0 %842
        %846 = vset.pattern.permute.xlu0 0
        %847 = vperm.xlu0 %846, %v781
        %v848 = vpop.permute.xlu0 %847
        %851 = vset.pattern.permute.xlu0 0
        %852 = vperm.xlu0 %851, %v782
        %v853 = vpop.permute.xlu0 %852
        %856 = vset.pattern.permute.xlu0 0
        %857 = vperm.xlu0 %856, %v783
        %v858 = vpop.permute.xlu0 %857
        %861 = vset.pattern.permute.xlu0 0
        %862 = vperm.xlu0 %861, %v784
        %v863 = vpop.permute.xlu0 %862
        %866 = vset.pattern.permute.xlu0 0
        %867 = vperm.xlu0 %866, %v785
        %v868 = vpop.permute.xlu0 %867
        %871 = vset.pattern.permute.xlu0 0
        %872 = vperm.xlu0 %871, %v786
        %v873 = vpop.permute.xlu0 %872
        %876 = vset.pattern.permute.xlu0 0
        %877 = vperm.xlu0 %876, %v787
        %v878 = vpop.permute.xlu0 %877
        %881 = vset.pattern.permute.xlu0 0
        %882 = vperm.xlu0 %881, %v788
        %v883 = vpop.permute.xlu0 %882
        %886 = vset.pattern.permute.xlu0 0
        %887 = vperm.xlu0 %886, %v789
        %v888 = vpop.permute.xlu0 %887
        %891 = vset.pattern.permute.xlu0 0
        %892 = vperm.xlu0 %891, %v790
        %v893 = vpop.permute.xlu0 %892
        %896 = vset.pattern.permute.xlu0 0
        %897 = vperm.xlu0 %896, %v791
        %v898 = vpop.permute.xlu0 %897
        %901 = vset.pattern.permute.xlu0 0
        %902 = vperm.xlu0 %901, %v792
        %v903 = vpop.permute.xlu0 %902
        %906 = vset.pattern.permute.xlu0 0
        %907 = vperm.xlu0 %906, %v793
        %v908 = vpop.permute.xlu0 %907
        %911 = vset.pattern.permute.xlu0 0
        %912 = vperm.xlu0 %911, %v794
        %v913 = vpop.permute.xlu0 %912
        %916 = vset.pattern.permute.xlu0 0
        %917 = vperm.xlu0 %916, %v795
        %v918 = vpop.permute.xlu0 %917
        %921 = vset.pattern.permute.xlu0 0
        %922 = vperm.xlu0 %921, %v796
        %v923 = vpop.permute.xlu0 %922
        %926 = vset.pattern.permute.xlu0 0
        %927 = vperm.xlu0 %926, %v797
        %v928 = vpop.permute.xlu0 %927
        %931 = vset.pattern.permute.xlu0 0
        %932 = vperm.xlu0 %931, %v798
        %v933 = vpop.permute.xlu0 %932
        %936 = vset.pattern.permute.xlu0 0
        %937 = vperm.xlu0 %936, %v799
        %v938 = vpop.permute.xlu0 %937
        %941 = vset.pattern.permute.xlu0 0
        %942 = vperm.xlu0 %941, %v800
        %v943 = vpop.permute.xlu0 %942
        %946 = vset.pattern.permute.xlu0 0
        %947 = vperm.xlu0 %946, %v801
        %v948 = vpop.permute.xlu0 %947
        %951 = vset.pattern.permute.xlu0 0
        %952 = vperm.xlu0 %951, %v802
        %v953 = vpop.permute.xlu0 %952
        %956 = vset.pattern.permute.xlu0 0
        %957 = vperm.xlu0 %956, %v803
        %v958 = vpop.permute.xlu0 %957
        %961 = vset.pattern.permute.xlu0 0
        %962 = vperm.xlu0 %961, %v804
        %v963 = vpop.permute.xlu0 %962
        %v965 = vmul.f32 %v647, %v808
        %v966 = vmul.f32 %v650, %v813
        %v967 = vmul.f32 %v655, %v818
        %v968 = vmul.f32 %v658, %v823
        %v969 = vmul.f32 %v663, %v828
        %v970 = vmul.f32 %v666, %v833
        %v971 = vmul.f32 %v671, %v838
        %v972 = vmul.f32 %v674, %v843
        %v973 = vmul.f32 %v679, %v848
        %v974 = vmul.f32 %v682, %v853
        %v975 = vmul.f32 %v687, %v858
        %v976 = vmul.f32 %v690, %v863
        %v977 = vmul.f32 %v695, %v868
        %v978 = vmul.f32 %v698, %v873
        %v979 = vmul.f32 %v703, %v878
        %v980 = vmul.f32 %v706, %v883
        %v981 = vmul.f32 %v711, %v888
        %v982 = vmul.f32 %v714, %v893
        %v983 = vmul.f32 %v719, %v898
        %v984 = vmul.f32 %v722, %v903
        %v985 = vmul.f32 %v727, %v908
        %v986 = vmul.f32 %v730, %v913
        %v987 = vmul.f32 %v735, %v918
        %v988 = vmul.f32 %v738, %v923
        %v989 = vmul.f32 %v743, %v928
        %v990 = vmul.f32 %v746, %v933
        %v991 = vmul.f32 %v751, %v938
        %v992 = vmul.f32 %v754, %v943
        %v993 = vmul.f32 %v759, %v948
        %v994 = vmul.f32 %v762, %v953
        %v995 = vmul.f32 %v767, %v958
        %v996 = vmul.f32 %v770, %v963
        %v997 = vpack.c.bf16 %v966, %v965
        %v998 = vpack.c.bf16 %v968, %v967
        %v999 = vpack.c.bf16 %v970, %v969
        %v1000 = vpack.c.bf16 %v972, %v971
        %v1001 = vpack.c.bf16 %v974, %v973
        %v1002 = vpack.c.bf16 %v976, %v975
        %v1003 = vpack.c.bf16 %v978, %v977
        %v1004 = vpack.c.bf16 %v980, %v979
        %v1005 = vpack.c.bf16 %v982, %v981
        %v1006 = vpack.c.bf16 %v984, %v983
        %v1007 = vpack.c.bf16 %v986, %v985
        %v1008 = vpack.c.bf16 %v988, %v987
        %v1009 = vpack.c.bf16 %v990, %v989
        %v1010 = vpack.c.bf16 %v992, %v991
        %v1011 = vpack.c.bf16 %v994, %v993
        %v1012 = vpack.c.bf16 %v996, %v995
        %1013 = vst [vmem:[#allocation4] sm:$0xff] %v997
        %1014 = vst [vmem:[#allocation4 + $0x10] sm:$0xff] %v998
        %1015 = vst [vmem:[#allocation4 + $0x20] sm:$0xff] %v999
        %1016 = vst [vmem:[#allocation4 + $0x30] sm:$0xff] %v1000
        %1017 = vst [vmem:[#allocation4 + $0x40] sm:$0xff] %v1001
        %1018 = vst [vmem:[#allocation4 + $0x50] sm:$0xff] %v1002
        %1019 = vst [vmem:[#allocation4 + $0x60] sm:$0xff] %v1003
        %1020 = vst [vmem:[#allocation4 + $0x70] sm:$0xff] %v1004
        %1021 = vst [vmem:[#allocation4 + $0x80] sm:$0xff] %v1005
        %1022 = vst [vmem:[#allocation4 + $0x90] sm:$0xff] %v1006
        %1023 = vst [vmem:[#allocation4 + $0xa0] sm:$0xff] %v1007
        %1024 = vst [vmem:[#allocation4 + $0xb0] sm:$0xff] %v1008
        %1025 = vst [vmem:[#allocation4 + $0xc0] sm:$0xff] %v1009
        %1026 = vst [vmem:[#allocation4 + $0xd0] sm:$0xff] %v1010
        %1027 = vst [vmem:[#allocation4 + $0xe0] sm:$0xff] %v1011
        %1028 = vst [vmem:[#allocation4 + $0xf0] sm:$0xff] %v1012
        %s1029 = sshra.s32 %s465, 4
        %s1030 = sand.u32 %s465, 15
        %s1031 = smul.addr %s1029, 8
        %s1032 = scalar_lea.vmem [#allocation2], %s1031
        %v1033 = vld [vmem:[%s1032] sm:$0xff]
        %v1034 = vld [vmem:[%s1032 + $0x8] sm:$0xff]
        %v1035 = vld [vmem:[%s1032 + $0x10] sm:$0xff]
        %v1036 = vld [vmem:[%s1032 + $0x18] sm:$0xff]
        %v1037 = vld [vmem:[%s1032 + $0x20] sm:$0xff]
        %v1038 = vld [vmem:[%s1032 + $0x28] sm:$0xff]
        %v1039 = vld [vmem:[%s1032 + $0x30] sm:$0xff]
        %v1040 = vld [vmem:[%s1032 + $0x38] sm:$0xff]
        %v1041 = vld [vmem:[%s1032 + $0x40] sm:$0xff]
        %v1042 = vld [vmem:[%s1032 + $0x48] sm:$0xff]
        %v1043 = vld [vmem:[%s1032 + $0x50] sm:$0xff]
        %v1044 = vld [vmem:[%s1032 + $0x58] sm:$0xff]
        %v1045 = vld [vmem:[%s1032 + $0x60] sm:$0xff]
        %v1046 = vld [vmem:[%s1032 + $0x68] sm:$0xff]
        %v1047 = vld [vmem:[%s1032 + $0x70] sm:$0xff]
        %v1048 = vld [vmem:[%s1032 + $0x78] sm:$0xff]
        %1049 = vst [vmem:[#allocation4 + $0x8] sm:$0xff] %v1033
        %1050 = vst [vmem:[#allocation4 + $0x18] sm:$0xff] %v1034
        %1051 = vst [vmem:[#allocation4 + $0x28] sm:$0xff] %v1035
        %1052 = vst [vmem:[#allocation4 + $0x38] sm:$0xff] %v1036
        %1053 = vst [vmem:[#allocation4 + $0x48] sm:$0xff] %v1037
        %1054 = vst [vmem:[#allocation4 + $0x58] sm:$0xff] %v1038
        %1055 = vst [vmem:[#allocation4 + $0x68] sm:$0xff] %v1039
        %1056 = vst [vmem:[#allocation4 + $0x78] sm:$0xff] %v1040
        %1057 = vst [vmem:[#allocation4 + $0x88] sm:$0xff] %v1041
        %1058 = vst [vmem:[#allocation4 + $0x98] sm:$0xff] %v1042
        %1059 = vst [vmem:[#allocation4 + $0xa8] sm:$0xff] %v1043
        %1060 = vst [vmem:[#allocation4 + $0xb8] sm:$0xff] %v1044
        %1061 = vst [vmem:[#allocation4 + $0xc8] sm:$0xff] %v1045
        %1062 = vst [vmem:[#allocation4 + $0xd8] sm:$0xff] %v1046
        %1063 = vst [vmem:[#allocation4 + $0xe8] sm:$0xff] %v1047
        %1064 = vst [vmem:[#allocation4 + $0xf8] sm:$0xff] %v1048
        %v1065 = vld [vmem:[#allocation4] sm:$0xff]
        %v1066 = vld [vmem:[#allocation4 + $0x8] sm:$0xff]
        %v1067 = vld [vmem:[#allocation4 + $0x10] sm:$0xff]
        %v1068 = vld [vmem:[#allocation4 + $0x18] sm:$0xff]
        %v1069 = vld [vmem:[#allocation4 + $0x20] sm:$0xff]
        %v1070 = vld [vmem:[#allocation4 + $0x28] sm:$0xff]
        %v1071 = vld [vmem:[#allocation4 + $0x30] sm:$0xff]
        %v1072 = vld [vmem:[#allocation4 + $0x38] sm:$0xff]
        %v1073 = vld [vmem:[#allocation4 + $0x40] sm:$0xff]
        %v1074 = vld [vmem:[#allocation4 + $0x48] sm:$0xff]
        %v1075 = vld [vmem:[#allocation4 + $0x50] sm:$0xff]
        %v1076 = vld [vmem:[#allocation4 + $0x58] sm:$0xff]
        %v1077 = vld [vmem:[#allocation4 + $0x60] sm:$0xff]
        %v1078 = vld [vmem:[#allocation4 + $0x68] sm:$0xff]
        %v1079 = vld [vmem:[#allocation4 + $0x70] sm:$0xff]
        %v1080 = vld [vmem:[#allocation4 + $0x78] sm:$0xff]
        %v1081 = vld [vmem:[#allocation4 + $0x80] sm:$0xff]
        %v1082 = vld [vmem:[#allocation4 + $0x88] sm:$0xff]
        %v1083 = vld [vmem:[#allocation4 + $0x90] sm:$0xff]
        %v1084 = vld [vmem:[#allocation4 + $0x98] sm:$0xff]
        %v1085 = vld [vmem:[#allocation4 + $0xa0] sm:$0xff]
        %v1086 = vld [vmem:[#allocation4 + $0xa8] sm:$0xff]
        %v1087 = vld [vmem:[#allocation4 + $0xb0] sm:$0xff]
        %v1088 = vld [vmem:[#allocation4 + $0xb8] sm:$0xff]
        %v1089 = vld [vmem:[#allocation4 + $0xc0] sm:$0xff]
        %v1090 = vld [vmem:[#allocation4 + $0xc8] sm:$0xff]
        %v1091 = vld [vmem:[#allocation4 + $0xd0] sm:$0xff]
        %v1092 = vld [vmem:[#allocation4 + $0xd8] sm:$0xff]
        %v1093 = vld [vmem:[#allocation4 + $0xe0] sm:$0xff]
        %v1094 = vld [vmem:[#allocation4 + $0xe8] sm:$0xff]
        %v1095 = vld [vmem:[#allocation4 + $0xf0] sm:$0xff]
        %v1096 = vld [vmem:[#allocation4 + $0xf8] sm:$0xff]
        %v1097 = vld [vmem:[%s395] sm:$0xf]
        %v1098 = vld [vmem:[%s395 + $0x4] sm:$0xf]
        %v1099 = vld [vmem:[%s395 + $0x8] sm:$0xf]
        %v1100 = vld [vmem:[%s395 + $0xc] sm:$0xf]
        %v1101 = vld [vmem:[%s395 + $0x10] sm:$0xf]
        %v1102 = vld [vmem:[%s395 + $0x14] sm:$0xf]
        %v1103 = vld [vmem:[%s395 + $0x18] sm:$0xf]
        %v1104 = vld [vmem:[%s395 + $0x1c] sm:$0xf]
        %v1105 = vld [vmem:[%s395 + $0x20] sm:$0xf]
        %v1106 = vld [vmem:[%s395 + $0x24] sm:$0xf]
        %v1107 = vld [vmem:[%s395 + $0x28] sm:$0xf]
        %v1108 = vld [vmem:[%s395 + $0x2c] sm:$0xf]
        %v1109 = vld [vmem:[%s395 + $0x30] sm:$0xf]
        %v1110 = vld [vmem:[%s395 + $0x34] sm:$0xf]
        %v1111 = vld [vmem:[%s395 + $0x38] sm:$0xf]
        %v1112 = vld [vmem:[%s395 + $0x3c] sm:$0xf]
        %v1113 = vld [vmem:[%s395 + $0x40] sm:$0xf]
        %v1114 = vld [vmem:[%s395 + $0x44] sm:$0xf]
        %v1115 = vld [vmem:[%s395 + $0x48] sm:$0xf]
        %v1116 = vld [vmem:[%s395 + $0x4c] sm:$0xf]
        %v1117 = vld [vmem:[%s395 + $0x50] sm:$0xf]
        %v1118 = vld [vmem:[%s395 + $0x54] sm:$0xf]
        %v1119 = vld [vmem:[%s395 + $0x58] sm:$0xf]
        %v1120 = vld [vmem:[%s395 + $0x5c] sm:$0xf]
        %v1121 = vld [vmem:[%s395 + $0x60] sm:$0xf]
        %v1122 = vld [vmem:[%s395 + $0x64] sm:$0xf]
        %v1123 = vld [vmem:[%s395 + $0x68] sm:$0xf]
        %v1124 = vld [vmem:[%s395 + $0x6c] sm:$0xf]
        %v1125 = vld [vmem:[%s395 + $0x70] sm:$0xf]
        %v1126 = vld [vmem:[%s395 + $0x74] sm:$0xf]
        %v1127 = vld [vmem:[%s395 + $0x78] sm:$0xf]
        %v1128 = vld [vmem:[%s395 + $0x7c] sm:$0xf]
        %v1129 = vld [vmem:[%s463] sm:$0x1]
        %v1131 = vlaneseq
        %v1132 = vshrl.u32 %v1131, 7
        %v1133 = vsub.s32 0, %v1132
        %v1134 = vrot.slane %v1129, %v1133
        %v1168 = vunpack.c.l.b16 %v1097
        %v1169 = vunpack.c.l.b16 %v1098
        %v1170 = vunpack.c.l.b16 %v1099
        %v1171 = vunpack.c.l.b16 %v1100
        %v1172 = vunpack.c.l.b16 %v1101
        %v1173 = vunpack.c.l.b16 %v1102
        %v1174 = vunpack.c.l.b16 %v1103
        %v1175 = vunpack.c.l.b16 %v1104
        %v1176 = vunpack.c.l.b16 %v1105
        %v1177 = vunpack.c.l.b16 %v1106
        %v1178 = vunpack.c.l.b16 %v1107
        %v1179 = vunpack.c.l.b16 %v1108
        %v1180 = vunpack.c.l.b16 %v1109
        %v1181 = vunpack.c.l.b16 %v1110
        %v1182 = vunpack.c.l.b16 %v1111
        %v1183 = vunpack.c.l.b16 %v1112
        %v1184 = vunpack.c.l.b16 %v1113
        %v1185 = vunpack.c.l.b16 %v1114
        %v1186 = vunpack.c.l.b16 %v1115
        %v1187 = vunpack.c.l.b16 %v1116
        %v1188 = vunpack.c.l.b16 %v1117
        %v1189 = vunpack.c.l.b16 %v1118
        %v1190 = vunpack.c.l.b16 %v1119
        %v1191 = vunpack.c.l.b16 %v1120
        %v1192 = vunpack.c.l.b16 %v1121
        %v1193 = vunpack.c.l.b16 %v1122
        %v1194 = vunpack.c.l.b16 %v1123
        %v1195 = vunpack.c.l.b16 %v1124
        %v1196 = vunpack.c.l.b16 %v1125
        %v1197 = vunpack.c.l.b16 %v1126
        %v1198 = vunpack.c.l.b16 %v1127
        %v1199 = vunpack.c.l.b16 %v1128
        %v1200 = vpack.c.b16 %v1169, %v1168
        %v1201 = vpack.c.b16 %v1171, %v1170
        %v1202 = vpack.c.b16 %v1173, %v1172
        %v1203 = vpack.c.b16 %v1175, %v1174
        %v1204 = vpack.c.b16 %v1177, %v1176
        %v1205 = vpack.c.b16 %v1179, %v1178
        %v1206 = vpack.c.b16 %v1181, %v1180
        %v1207 = vpack.c.b16 %v1183, %v1182
        %v1208 = vpack.c.b16 %v1185, %v1184
        %v1209 = vpack.c.b16 %v1187, %v1186
        %v1210 = vpack.c.b16 %v1189, %v1188
        %v1211 = vpack.c.b16 %v1191, %v1190
        %v1212 = vpack.c.b16 %v1193, %v1192
        %v1213 = vpack.c.b16 %v1195, %v1194
        %v1214 = vpack.c.b16 %v1197, %v1196
        %v1215 = vpack.c.b16 %v1199, %v1198
        %1232 = vmatprep.subr.bf16.mxu0 0
        %1233 = vmatpush1.bf16.msra.mxu0 %v1200
        %1234 = vmatprep.subr.bf16.mxu0 0
        %1235 = vmatpush1.bf16.msra.mxu0 %v1201
        %1236 = vmatprep.subr.bf16.mxu0 0
        %1237 = vmatpush1.bf16.msra.mxu0 %v1202
        %1238 = vmatprep.subr.bf16.mxu0 0
        %1239 = vmatpush1.bf16.msra.mxu0 %v1203
        %1240 = vmatprep.subr.bf16.mxu0 0
        %1241 = vmatpush1.bf16.msra.mxu0 %v1204
        %1242 = vmatprep.subr.bf16.mxu0 0
        %1243 = vmatpush1.bf16.msra.mxu0 %v1205
        %1244 = vmatprep.subr.bf16.mxu0 0
        %1245 = vmatpush1.bf16.msra.mxu0 %v1206
        %1246 = vmatprep.subr.bf16.mxu0 0
        %1247 = vmatpush1.bf16.msra.mxu0 %v1207
        %1248 = vmatprep.subr.bf16.mxu0 0
        %1249 = vmatpush1.bf16.msra.mxu0 %v1208
        %1250 = vmatprep.subr.bf16.mxu0 0
        %1251 = vmatpush1.bf16.msra.mxu0 %v1209
        %1252 = vmatprep.subr.bf16.mxu0 0
        %1253 = vmatpush1.bf16.msra.mxu0 %v1210
        %1254 = vmatprep.subr.bf16.mxu0 0
        %1255 = vmatpush1.bf16.msra.mxu0 %v1211
        %1256 = vmatprep.subr.bf16.mxu0 0
        %1257 = vmatpush1.bf16.msra.mxu0 %v1212
        %1258 = vmatprep.subr.bf16.mxu0 0
        %1259 = vmatpush1.bf16.msra.mxu0 %v1213
        %1260 = vmatprep.subr.bf16.mxu0 0
        %1261 = vmatpush1.bf16.msra.mxu0 %v1214
        %1262 = vmatprep.subr.bf16.mxu0 0
        %1263 = vmatpush1.bf16.msra.mxu0 %v1215
        %1264 = vmatprep.mubr.bf16.mxu0 %v1066
        %1265 = vmatmul.mubr.bf16.gmra.mrb[0].mxu0 %v1065
        %v1266 = vpop.f32.mrb[0].mxu0
        %v1267 = vadd.f32 %v1134, %v1266
        %v1268 = vpop.f32.mrb[0].mxu0
        %v1269 = vpop.f32.mrb[0].mxu0
        %v1270 = vadd.f32 %v1134, %v1269
        %v1271 = vpop.f32.mrb[0].mxu0
        %1272 = vmatprep.mubr.bf16.mxu0 %v1068
        %1273 = vmatmul.mubr.bf16.gmra.mrb[0].mxu0 %v1067
        %v1274 = vpop.f32.mrb[0].mxu0
        %v1275 = vadd.f32 %v1134, %v1274
        %v1276 = vpop.f32.mrb[0].mxu0
        %v1277 = vpop.f32.mrb[0].mxu0
        %v1278 = vadd.f32 %v1134, %v1277
        %v1279 = vpop.f32.mrb[0].mxu0
        %1280 = vmatprep.mubr.bf16.mxu0 %v1070
        %1281 = vmatmul.mubr.bf16.gmra.mrb[0].mxu0 %v1069
        %v1282 = vpop.f32.mrb[0].mxu0
        %v1283 = vadd.f32 %v1134, %v1282
        %v1284 = vpop.f32.mrb[0].mxu0
        %v1285 = vpop.f32.mrb[0].mxu0
        %v1286 = vadd.f32 %v1134, %v1285
        %v1287 = vpop.f32.mrb[0].mxu0
        %1288 = vmatprep.mubr.bf16.mxu0 %v1072
        %1289 = vmatmul.mubr.bf16.gmra.mrb[0].mxu0 %v1071
        %v1290 = vpop.f32.mrb[0].mxu0
        %v1291 = vadd.f32 %v1134, %v1290
        %v1292 = vpop.f32.mrb[0].mxu0
        %v1293 = vpop.f32.mrb[0].mxu0
        %v1294 = vadd.f32 %v1134, %v1293
        %v1295 = vpop.f32.mrb[0].mxu0
        %1296 = vmatprep.mubr.bf16.mxu0 %v1074
        %1297 = vmatmul.mubr.bf16.gmra.mrb[0].mxu0 %v1073
        %v1298 = vpop.f32.mrb[0].mxu0
        %v1299 = vadd.f32 %v1134, %v1298
        %v1300 = vpop.f32.mrb[0].mxu0
        %v1301 = vpop.f32.mrb[0].mxu0
        %v1302 = vadd.f32 %v1134, %v1301
        %v1303 = vpop.f32.mrb[0].mxu0
        %1304 = vmatprep.mubr.bf16.mxu0 %v1076
        %1305 = vmatmul.mubr.bf16.gmra.mrb[0].mxu0 %v1075
        %v1306 = vpop.f32.mrb[0].mxu0
        %v1307 = vadd.f32 %v1134, %v1306
        %v1308 = vpop.f32.mrb[0].mxu0
        %v1309 = vpop.f32.mrb[0].mxu0
        %v1310 = vadd.f32 %v1134, %v1309
        %v1311 = vpop.f32.mrb[0].mxu0
        %1312 = vmatprep.mubr.bf16.mxu0 %v1078
        %1313 = vmatmul.mubr.bf16.gmra.mrb[0].mxu0 %v1077
        %v1314 = vpop.f32.mrb[0].mxu0
        %v1315 = vadd.f32 %v1134, %v1314
        %v1316 = vpop.f32.mrb[0].mxu0
        %v1317 = vpop.f32.mrb[0].mxu0
        %v1318 = vadd.f32 %v1134, %v1317
        %v1319 = vpop.f32.mrb[0].mxu0
        %1320 = vmatprep.mubr.bf16.mxu0 %v1080
        %1321 = vmatmul.mubr.bf16.gmra.mrb[0].mxu0 %v1079
        %v1322 = vpop.f32.mrb[0].mxu0
        %v1323 = vadd.f32 %v1134, %v1322
        %v1324 = vpop.f32.mrb[0].mxu0
        %v1325 = vpop.f32.mrb[0].mxu0
        %v1326 = vadd.f32 %v1134, %v1325
        %v1327 = vpop.f32.mrb[0].mxu0
        %1328 = vmatprep.mubr.bf16.mxu0 %v1082
        %1329 = vmatmul.mubr.bf16.gmra.mrb[0].mxu0 %v1081
        %v1330 = vpop.f32.mrb[0].mxu0
        %v1331 = vadd.f32 %v1134, %v1330
        %v1332 = vpop.f32.mrb[0].mxu0
        %v1333 = vpop.f32.mrb[0].mxu0
        %v1334 = vadd.f32 %v1134, %v1333
        %v1335 = vpop.f32.mrb[0].mxu0
        %1336 = vmatprep.mubr.bf16.mxu0 %v1084
        %1337 = vmatmul.mubr.bf16.gmra.mrb[0].mxu0 %v1083
        %v1338 = vpop.f32.mrb[0].mxu0
        %v1339 = vadd.f32 %v1134, %v1338
        %v1340 = vpop.f32.mrb[0].mxu0
        %v1341 = vpop.f32.mrb[0].mxu0
        %v1342 = vadd.f32 %v1134, %v1341
        %v1343 = vpop.f32.mrb[0].mxu0
        %1344 = vmatprep.mubr.bf16.mxu0 %v1086
        %1345 = vmatmul.mubr.bf16.gmra.mrb[0].mxu0 %v1085
        %v1346 = vpop.f32.mrb[0].mxu0
        %v1347 = vadd.f32 %v1134, %v1346
        %v1348 = vpop.f32.mrb[0].mxu0
        %v1349 = vpop.f32.mrb[0].mxu0
        %v1350 = vadd.f32 %v1134, %v1349
        %v1351 = vpop.f32.mrb[0].mxu0
        %1352 = vmatprep.mubr.bf16.mxu0 %v1088
        %1353 = vmatmul.mubr.bf16.gmra.mrb[0].mxu0 %v1087
        %v1354 = vpop.f32.mrb[0].mxu0
        %v1355 = vadd.f32 %v1134, %v1354
        %v1356 = vpop.f32.mrb[0].mxu0
        %v1357 = vpop.f32.mrb[0].mxu0
        %v1358 = vadd.f32 %v1134, %v1357
        %v1359 = vpop.f32.mrb[0].mxu0
        %1360 = vmatprep.mubr.bf16.mxu0 %v1090
        %1361 = vmatmul.mubr.bf16.gmra.mrb[0].mxu0 %v1089
        %v1362 = vpop.f32.mrb[0].mxu0
        %v1363 = vadd.f32 %v1134, %v1362
        %v1364 = vpop.f32.mrb[0].mxu0
        %v1365 = vpop.f32.mrb[0].mxu0
        %v1366 = vadd.f32 %v1134, %v1365
        %v1367 = vpop.f32.mrb[0].mxu0
        %1368 = vmatprep.mubr.bf16.mxu0 %v1092
        %1369 = vmatmul.mubr.bf16.gmra.mrb[0].mxu0 %v1091
        %v1370 = vpop.f32.mrb[0].mxu0
        %v1371 = vadd.f32 %v1134, %v1370
        %v1372 = vpop.f32.mrb[0].mxu0
        %v1373 = vpop.f32.mrb[0].mxu0
        %v1374 = vadd.f32 %v1134, %v1373
        %v1375 = vpop.f32.mrb[0].mxu0
        %1376 = vmatprep.mubr.bf16.mxu0 %v1094
        %1377 = vmatmul.mubr.bf16.gmra.mrb[0].mxu0 %v1093
        %v1378 = vpop.f32.mrb[0].mxu0
        %v1379 = vadd.f32 %v1134, %v1378
        %v1380 = vpop.f32.mrb[0].mxu0
        %v1381 = vpop.f32.mrb[0].mxu0
        %v1382 = vadd.f32 %v1134, %v1381
        %v1383 = vpop.f32.mrb[0].mxu0
        %1384 = vmatprep.mubr.bf16.mxu0 %v1096
        %1385 = vmatmul.mubr.bf16.gmra.mrb[0].mxu0 %v1095
        %v1386 = vpop.f32.mrb[0].mxu0
        %v1387 = vadd.f32 %v1134, %v1386
        %v1388 = vpop.f32.mrb[0].mxu0
        %v1389 = vpop.f32.mrb[0].mxu0
        %v1390 = vadd.f32 %v1134, %v1389
        %v1391 = vpop.f32.mrb[0].mxu0
        %1392 = vdwg.mxu0
        %v1393 = vmax.f32 %v1267, 0.0
        %v1394 = vmax.f32 %v1270, 0.0
        %v1395 = vmax.f32 %v1275, 0.0
        %v1396 = vmax.f32 %v1278, 0.0
        %v1397 = vmax.f32 %v1283, 0.0
        %v1398 = vmax.f32 %v1286, 0.0
        %v1399 = vmax.f32 %v1291, 0.0
        %v1400 = vmax.f32 %v1294, 0.0
        %v1401 = vmax.f32 %v1299, 0.0
        %v1402 = vmax.f32 %v1302, 0.0
        %v1403 = vmax.f32 %v1307, 0.0
        %v1404 = vmax.f32 %v1310, 0.0
        %v1405 = vmax.f32 %v1315, 0.0
        %v1406 = vmax.f32 %v1318, 0.0
        %v1407 = vmax.f32 %v1323, 0.0
        %v1408 = vmax.f32 %v1326, 0.0
        %v1409 = vmax.f32 %v1331, 0.0
        %v1410 = vmax.f32 %v1334, 0.0
        %v1411 = vmax.f32 %v1339, 0.0
        %v1412 = vmax.f32 %v1342, 0.0
        %v1413 = vmax.f32 %v1347, 0.0
        %v1414 = vmax.f32 %v1350, 0.0
        %v1415 = vmax.f32 %v1355, 0.0
        %v1416 = vmax.f32 %v1358, 0.0
        %v1417 = vmax.f32 %v1363, 0.0
        %v1418 = vmax.f32 %v1366, 0.0
        %v1419 = vmax.f32 %v1371, 0.0
        %v1420 = vmax.f32 %v1374, 0.0
        %v1421 = vmax.f32 %v1379, 0.0
        %v1422 = vmax.f32 %v1382, 0.0
        %v1423 = vmax.f32 %v1387, 0.0
        %v1424 = vmax.f32 %v1390, 0.0
        %p1425 = scmp.lt.s32.totalorder %s31, 3
        // Predicated region
        $region111: #{tpu_custom_call.1} parent=55 // pred_check
          %p1426 = pneg %p1425
        $region112: #{tpu_custom_call.1} parent=55 // pred_check_branch
          %1428 = sbr.rel (%p1426) target = $region114
        $region113: #{tpu_custom_call.1} parent=55 // pred_region
          %s1429 = scalar_lea.vmem [#allocation3], %s465
          %1430 = vst [vmem:[%s1429] sm:$0xff] %v1393
          %1431 = vst [vmem:[%s1429 + $0x8] sm:$0xff] %v1394
          %1432 = vst [vmem:[%s1429 + $0x10] sm:$0xff] %v1395
          %1433 = vst [vmem:[%s1429 + $0x18] sm:$0xff] %v1396
          %1434 = vst [vmem:[%s1429 + $0x20] sm:$0xff] %v1397
          %1435 = vst [vmem:[%s1429 + $0x28] sm:$0xff] %v1398
          %1436 = vst [vmem:[%s1429 + $0x30] sm:$0xff] %v1399
          %1437 = vst [vmem:[%s1429 + $0x38] sm:$0xff] %v1400
          %1438 = vst [vmem:[%s1429 + $0x40] sm:$0xff] %v1401
          %1439 = vst [vmem:[%s1429 + $0x48] sm:$0xff] %v1402
          %1440 = vst [vmem:[%s1429 + $0x50] sm:$0xff] %v1403
          %1441 = vst [vmem:[%s1429 + $0x58] sm:$0xff] %v1404
          %1442 = vst [vmem:[%s1429 + $0x60] sm:$0xff] %v1405
          %1443 = vst [vmem:[%s1429 + $0x68] sm:$0xff] %v1406
          %1444 = vst [vmem:[%s1429 + $0x70] sm:$0xff] %v1407
          %1445 = vst [vmem:[%s1429 + $0x78] sm:$0xff] %v1408
          %1446 = vst [vmem:[%s1429 + $0x80] sm:$0xff] %v1409
          %1447 = vst [vmem:[%s1429 + $0x88] sm:$0xff] %v1410
          %1448 = vst [vmem:[%s1429 + $0x90] sm:$0xff] %v1411
          %1449 = vst [vmem:[%s1429 + $0x98] sm:$0xff] %v1412
          %1450 = vst [vmem:[%s1429 + $0xa0] sm:$0xff] %v1413
          %1451 = vst [vmem:[%s1429 + $0xa8] sm:$0xff] %v1414
          %1452 = vst [vmem:[%s1429 + $0xb0] sm:$0xff] %v1415
          %1453 = vst [vmem:[%s1429 + $0xb8] sm:$0xff] %v1416
          %1454 = vst [vmem:[%s1429 + $0xc0] sm:$0xff] %v1417
          %1455 = vst [vmem:[%s1429 + $0xc8] sm:$0xff] %v1418
          %1456 = vst [vmem:[%s1429 + $0xd0] sm:$0xff] %v1419
          %1457 = vst [vmem:[%s1429 + $0xd8] sm:$0xff] %v1420
          %1458 = vst [vmem:[%s1429 + $0xe0] sm:$0xff] %v1421
          %1459 = vst [vmem:[%s1429 + $0xe8] sm:$0xff] %v1422
          %1460 = vst [vmem:[%s1429 + $0xf0] sm:$0xff] %v1423
          %1461 = vst [vmem:[%s1429 + $0xf8] sm:$0xff] %v1424
        $region114: #{tpu_custom_call.1} parent=55 // pred_fallthru
          _
        %p1462 = scmp.eq.s32.totalorder %s31, 3
        %p1463 = pnand %p1462, %p467
        %p1464 = pneg %p1463
        // Predicated region
        $region115: #{tpu_custom_call.1} parent=55 // pred_check
          _
        $region116: #{tpu_custom_call.1} parent=55 // pred_check_branch
          %1466 = sbr.rel (%p1463) target = $region118
        $region117: #{tpu_custom_call.1} parent=55 // pred_region
          %1467 = vst [vmem:[#allocation5] sm:$0xff] 0.0
        $region118: #{tpu_custom_call.1} parent=55 // pred_fallthru
          _
        // Predicated region
        $region119: #{tpu_custom_call.1} parent=55 // pred_check
          %p1468 = pneg %p1462
        $region120: #{tpu_custom_call.1} parent=55 // pred_check_branch
          %1470 = sbr.rel (%p1468) target = $region122
        $region121: #{tpu_custom_call.1} parent=55 // pred_region
          %v1471 = vld [vmem:[#allocation5] sm:$0xff]
          %v1472 = vld [vmem:[#allocation7] sm:$0xff]
          %v1473 = vld [vmem:[#allocation7 + $0x8] sm:$0xff]
          %1474 = vmatprep.subr.mxu0 0.0
          %1475 = vmatpush1.msra.mxu0 %v1393
          %1476 = vmatprep.subr.mxu0 0.0
          %1477 = vmatpush1.msra.mxu0 %v1394
          %1478 = vmatprep.subr.mxu0 0.0
          %1479 = vmatpush1.msra.mxu0 %v1395
          %1480 = vmatprep.subr.mxu0 0.0
          %1481 = vmatpush1.msra.mxu0 %v1396
          %1482 = vmatprep.subr.mxu0 0.0
          %1483 = vmatpush1.msra.mxu0 %v1397
          %1484 = vmatprep.subr.mxu0 0.0
          %1485 = vmatpush1.msra.mxu0 %v1398
          %1486 = vmatprep.subr.mxu0 0.0
          %1487 = vmatpush1.msra.mxu0 %v1399
          %1488 = vmatprep.subr.mxu0 0.0
          %1489 = vmatpush1.msra.mxu0 %v1400
          %1490 = vmatprep.subr.mxu0 0.0
          %1491 = vmatpush1.msra.mxu0 %v1401
          %1492 = vmatprep.subr.mxu0 0.0
          %1493 = vmatpush1.msra.mxu0 %v1402
          %1494 = vmatprep.subr.mxu0 0.0
          %1495 = vmatpush1.msra.mxu0 %v1403
          %1496 = vmatprep.subr.mxu0 0.0
          %1497 = vmatpush1.msra.mxu0 %v1404
          %1498 = vmatprep.subr.mxu0 0.0
          %1499 = vmatpush1.msra.mxu0 %v1405
          %1500 = vmatprep.subr.mxu0 0.0
          %1501 = vmatpush1.msra.mxu0 %v1406
          %1502 = vmatprep.subr.mxu0 0.0
          %1503 = vmatpush1.msra.mxu0 %v1407
          %1504 = vmatprep.subr.mxu0 0.0
          %1505 = vmatpush1.msra.mxu0 %v1408
          %1506 = vmatprep.subr.mxu0 0.0
          %1507 = vmatpush1.msra.mxu0 %v1409
          %1508 = vmatprep.subr.mxu0 0.0
          %1509 = vmatpush1.msra.mxu0 %v1410
          %1510 = vmatprep.subr.mxu0 0.0
          %1511 = vmatpush1.msra.mxu0 %v1411
          %1512 = vmatprep.subr.mxu0 0.0
          %1513 = vmatpush1.msra.mxu0 %v1412
          %1514 = vmatprep.subr.mxu0 0.0
          %1515 = vmatpush1.msra.mxu0 %v1413
          %1516 = vmatprep.subr.mxu0 0.0
          %1517 = vmatpush1.msra.mxu0 %v1414
          %1518 = vmatprep.subr.mxu0 0.0
          %1519 = vmatpush1.msra.mxu0 %v1415
          %1520 = vmatprep.subr.mxu0 0.0
          %1521 = vmatpush1.msra.mxu0 %v1416
          %1522 = vmatprep.subr.mxu0 0.0
          %1523 = vmatpush1.msra.mxu0 %v1417
          %1524 = vmatprep.subr.mxu0 0.0
          %1525 = vmatpush1.msra.mxu0 %v1418
          %1526 = vmatprep.subr.mxu0 0.0
          %1527 = vmatpush1.msra.mxu0 %v1419
          %1528 = vmatprep.subr.mxu0 0.0
          %1529 = vmatpush1.msra.mxu0 %v1420
          %1530 = vmatprep.subr.mxu0 0.0
          %1531 = vmatpush1.msra.mxu0 %v1421
          %1532 = vmatprep.subr.mxu0 0.0
          %1533 = vmatpush1.msra.mxu0 %v1422
          %1534 = vmatprep.subr.mxu0 0.0
          %1535 = vmatpush1.msra.mxu0 %v1423
          %1536 = vmatprep.subr.mxu0 0.0
          %1537 = vmatpush1.msra.mxu0 %v1424
          %1538 = vmatprep.mubr.f32.mxu0 %v1473
          %1539 = vmatmul.mubr.f32.gmra.mrb[0].mxu0 %v1472
          %v1540 = vpop.f32.mrb[0].mxu0
          %v1541 = vadd.f32 0.0, %v1540
          %v1542 = vpop.f32.mrb[0].mxu0
          %1543 = vdwg.mxu0
          %v1544 = vadd.f32 %v1471, %v1541
          %1545 = vst [vmem:[#allocation5] sm:$0xff] %v1544
        $region122: #{tpu_custom_call.1} parent=55 // pred_fallthru
          _
        %p1546 = pnand %p467, %p1425
        %p1547 = pneg %p1546
        // Predicated region
        $region123: #{tpu_custom_call.1} parent=55 // pred_check
          _
        $region124: #{tpu_custom_call.1} parent=55 // pred_check_branch
          %1549 = sbr.rel (%p1546) target = $region126
        $region125: #{tpu_custom_call.1} parent=55 // pred_region
          %v1550 = vld [vmem:[#allocation3] sm:$0xff]
          %v1551 = vld [vmem:[#allocation3 + $0x8] sm:$0xff]
          %v1552 = vld [vmem:[#allocation3 + $0x10] sm:$0xff]
          %v1553 = vld [vmem:[#allocation3 + $0x18] sm:$0xff]
          %v1554 = vld [vmem:[#allocation3 + $0x20] sm:$0xff]
          %v1555 = vld [vmem:[#allocation3 + $0x28] sm:$0xff]
          %v1556 = vld [vmem:[#allocation3 + $0x30] sm:$0xff]
          %v1557 = vld [vmem:[#allocation3 + $0x38] sm:$0xff]
          %v1558 = vld [vmem:[#allocation3 + $0x40] sm:$0xff]
          %v1559 = vld [vmem:[#allocation3 + $0x48] sm:$0xff]
          %v1560 = vld [vmem:[#allocation3 + $0x50] sm:$0xff]
          %v1561 = vld [vmem:[#allocation3 + $0x58] sm:$0xff]
          %v1562 = vld [vmem:[#allocation3 + $0x60] sm:$0xff]
          %v1563 = vld [vmem:[#allocation3 + $0x68] sm:$0xff]
          %v1564 = vld [vmem:[#allocation3 + $0x70] sm:$0xff]
          %v1565 = vld [vmem:[#allocation3 + $0x78] sm:$0xff]
          %v1566 = vld [vmem:[#allocation3 + $0x80] sm:$0xff]
          %v1567 = vld [vmem:[#allocation3 + $0x88] sm:$0xff]
          %v1568 = vld [vmem:[#allocation3 + $0x90] sm:$0xff]
          %v1569 = vld [vmem:[#allocation3 + $0x98] sm:$0xff]
          %v1570 = vld [vmem:[#allocation3 + $0xa0] sm:$0xff]
          %v1571 = vld [vmem:[#allocation3 + $0xa8] sm:$0xff]
          %v1572 = vld [vmem:[#allocation3 + $0xb0] sm:$0xff]
          %v1573 = vld [vmem:[#allocation3 + $0xb8] sm:$0xff]
          %v1574 = vld [vmem:[#allocation3 + $0xc0] sm:$0xff]
          %v1575 = vld [vmem:[#allocation3 + $0xc8] sm:$0xff]
          %v1576 = vld [vmem:[#allocation3 + $0xd0] sm:$0xff]
          %v1577 = vld [vmem:[#allocation3 + $0xd8] sm:$0xff]
          %v1578 = vld [vmem:[#allocation3 + $0xe0] sm:$0xff]
          %v1579 = vld [vmem:[#allocation3 + $0xe8] sm:$0xff]
          %v1580 = vld [vmem:[#allocation3 + $0xf0] sm:$0xff]
          %v1581 = vld [vmem:[#allocation3 + $0xf8] sm:$0xff]
          %v1582 = vpack.c.bf16 %v1551, %v1550
          %v1583 = vpack.c.bf16 %v1553, %v1552
          %v1584 = vpack.c.bf16 %v1555, %v1554
          %v1585 = vpack.c.bf16 %v1557, %v1556
          %v1586 = vpack.c.bf16 %v1559, %v1558
          %v1587 = vpack.c.bf16 %v1561, %v1560
          %v1588 = vpack.c.bf16 %v1563, %v1562
          %v1589 = vpack.c.bf16 %v1565, %v1564
          %v1590 = vpack.c.bf16 %v1567, %v1566
          %v1591 = vpack.c.bf16 %v1569, %v1568
          %v1592 = vpack.c.bf16 %v1571, %v1570
          %v1593 = vpack.c.bf16 %v1573, %v1572
          %v1594 = vpack.c.bf16 %v1575, %v1574
          %v1595 = vpack.c.bf16 %v1577, %v1576
          %v1596 = vpack.c.bf16 %v1579, %v1578
          %v1597 = vpack.c.bf16 %v1581, %v1580
          %1598 = vst [vmem:[#allocation2] sm:$0xff] %v1582
          %1599 = vst [vmem:[#allocation2 + $0x8] sm:$0xff] %v1583
          %1600 = vst [vmem:[#allocation2 + $0x10] sm:$0xff] %v1584
          %1601 = vst [vmem:[#allocation2 + $0x18] sm:$0xff] %v1585
          %1602 = vst [vmem:[#allocation2 + $0x20] sm:$0xff] %v1586
          %1603 = vst [vmem:[#allocation2 + $0x28] sm:$0xff] %v1587
          %1604 = vst [vmem:[#allocation2 + $0x30] sm:$0xff] %v1588
          %1605 = vst [vmem:[#allocation2 + $0x38] sm:$0xff] %v1589
          %1606 = vst [vmem:[#allocation2 + $0x40] sm:$0xff] %v1590
          %1607 = vst [vmem:[#allocation2 + $0x48] sm:$0xff] %v1591
          %1608 = vst [vmem:[#allocation2 + $0x50] sm:$0xff] %v1592
          %1609 = vst [vmem:[#allocation2 + $0x58] sm:$0xff] %v1593
          %1610 = vst [vmem:[#allocation2 + $0x60] sm:$0xff] %v1594
          %1611 = vst [vmem:[#allocation2 + $0x68] sm:$0xff] %v1595
          %1612 = vst [vmem:[#allocation2 + $0x70] sm:$0xff] %v1596
          %1613 = vst [vmem:[#allocation2 + $0x78] sm:$0xff] %v1597
        $region126: #{tpu_custom_call.1} parent=55 // pred_fallthru
          _
        // Predicated region
        $region127: #{tpu_custom_call.1} parent=55 // pred_check
          _
        $region128: #{tpu_custom_call.1} parent=55 // pred_check_branch
          %1615 = sbr.rel (%p1463) target = $region130
        $region129: #{tpu_custom_call.1} parent=55 // pred_region
          %v1616 = vld [vmem:[#allocation5] sm:$0xff]
          %v1617 = vld [vmem:[#allocation12] sm:$0xff]
          %v1618 = vld [vmem:[#allocation12 + $0x8] sm:$0xff]
          %v1619 = vld [vmem:[#allocation12 + $0x10] sm:$0xff]
          %v1620 = vld [vmem:[#allocation12 + $0x18] sm:$0xff]
          %v1621 = vld [vmem:[#allocation12 + $0x20] sm:$0xff]
          %v1622 = vld [vmem:[#allocation12 + $0x28] sm:$0xff]
          %v1623 = vld [vmem:[#allocation12 + $0x30] sm:$0xff]
          %v1624 = vld [vmem:[#allocation12 + $0x38] sm:$0xff]
          %v1625 = vld [vmem:[#allocation12 + $0x40] sm:$0xff]
          %v1626 = vld [vmem:[#allocation12 + $0x48] sm:$0xff]
          %v1627 = vld [vmem:[#allocation12 + $0x50] sm:$0xff]
          %v1628 = vld [vmem:[#allocation12 + $0x58] sm:$0xff]
          %v1629 = vld [vmem:[#allocation12 + $0x60] sm:$0xff]
          %v1630 = vld [vmem:[#allocation12 + $0x68] sm:$0xff]
          %v1631 = vld [vmem:[#allocation12 + $0x70] sm:$0xff]
          %v1632 = vld [vmem:[#allocation12 + $0x78] sm:$0xff]
          %v1633 = vld [vmem:[%s7] sm:$0x1]
          %v1635 = vlaneseq
          %v1636 = vshrl.u32 %v1635, 7
          %v1637 = vsub.s32 0, %v1636
          %v1638 = vrot.slane %v1633, %v1637
          %1640 = vmatprep.subr.mxu0 0.0
          %1641 = vmatpush1.msra.mxu0 %v1617
          %1642 = vmatprep.subr.mxu0 0.0
          %1643 = vmatpush1.msra.mxu0 %v1618
          %1644 = vmatprep.subr.mxu0 0.0
          %1645 = vmatpush1.msra.mxu0 %v1619
          %1646 = vmatprep.subr.mxu0 0.0
          %1647 = vmatpush1.msra.mxu0 %v1620
          %1648 = vmatprep.subr.mxu0 0.0
          %1649 = vmatpush1.msra.mxu0 %v1621
          %1650 = vmatprep.subr.mxu0 0.0
          %1651 = vmatpush1.msra.mxu0 %v1622
          %1652 = vmatprep.subr.mxu0 0.0
          %1653 = vmatpush1.msra.mxu0 %v1623
          %1654 = vmatprep.subr.mxu0 0.0
          %1655 = vmatpush1.msra.mxu0 %v1624
          %1656 = vmatprep.subr.mxu0 0.0
          %1657 = vmatpush1.msra.mxu0 %v1625
          %1658 = vmatprep.subr.mxu0 0.0
          %1659 = vmatpush1.msra.mxu0 %v1626
          %1660 = vmatprep.subr.mxu0 0.0
          %1661 = vmatpush1.msra.mxu0 %v1627
          %1662 = vmatprep.subr.mxu0 0.0
          %1663 = vmatpush1.msra.mxu0 %v1628
          %1664 = vmatprep.subr.mxu0 0.0
          %1665 = vmatpush1.msra.mxu0 %v1629
          %1666 = vmatprep.subr.mxu0 0.0
          %1667 = vmatpush1.msra.mxu0 %v1630
          %1668 = vmatprep.subr.mxu0 0.0
          %1669 = vmatpush1.msra.mxu0 %v1631
          %1670 = vmatprep.subr.mxu0 0.0
          %1671 = vmatpush1.msra.mxu0 %v1632
          %1672 = vmatprep.subr.mxu0 0.0
          %1673 = vmatpush1.msra.mxu0 0.0
          %1674 = vmatprep.subr.mxu0 0.0
          %1675 = vmatpush1.msra.mxu0 0.0
          %1676 = vmatprep.subr.mxu0 0.0
          %1677 = vmatpush1.msra.mxu0 0.0
          %1678 = vmatprep.subr.mxu0 0.0
          %1679 = vmatpush1.msra.mxu0 0.0
          %1680 = vmatprep.subr.mxu0 0.0
          %1681 = vmatpush1.msra.mxu0 0.0
          %1682 = vmatprep.subr.mxu0 0.0
          %1683 = vmatpush1.msra.mxu0 0.0
          %1684 = vmatprep.subr.mxu0 0.0
          %1685 = vmatpush1.msra.mxu0 0.0
          %1686 = vmatprep.subr.mxu0 0.0
          %1687 = vmatpush1.msra.mxu0 0.0
          %1688 = vmatprep.subr.mxu0 0.0
          %1689 = vmatpush1.msra.mxu0 0.0
          %1690 = vmatprep.subr.mxu0 0.0
          %1691 = vmatpush1.msra.mxu0 0.0
          %1692 = vmatprep.subr.mxu0 0.0
          %1693 = vmatpush1.msra.mxu0 0.0
          %1694 = vmatprep.subr.mxu0 0.0
          %1695 = vmatpush1.msra.mxu0 0.0
          %1696 = vmatprep.subr.mxu0 0.0
          %1697 = vmatpush1.msra.mxu0 0.0
          %1698 = vmatprep.subr.mxu0 0.0
          %1699 = vmatpush1.msra.mxu0 0.0
          %1700 = vmatprep.subr.mxu0 0.0
          %1701 = vmatpush1.msra.mxu0 0.0
          %1702 = vmatprep.subr.mxu0 0.0
          %1703 = vmatpush1.msra.mxu0 0.0
          %1704 = vmatprep.mubr.f32.mxu0 0.0
          %1705 = vmatmul.mubr.f32.gmra.mrb[0].mxu0 %v1616
          %v1706 = vpop.f32.mrb[0].mxu0
          %v1707 = vadd.f32 %v1638, %v1706
          %v1708 = vpop.f32.mrb[0].mxu0
          %1709 = vdwg.mxu0
          %v1710 = vmax.f32 %v1707, 0.0
          %v1711 = vld [vmem:[#allocation13] sm:$0xff]
          %v1712 = vld [vmem:[#allocation13 + $0x8] sm:$0xff]
          %v1713 = vld [vmem:[#allocation13 + $0x10] sm:$0xff]
          %v1714 = vld [vmem:[#allocation13 + $0x18] sm:$0xff]
          %v1715 = vld [vmem:[#allocation13 + $0x20] sm:$0xff]
          %v1716 = vld [vmem:[#allocation13 + $0x28] sm:$0xff]
          %v1717 = vld [vmem:[#allocation13 + $0x30] sm:$0xff]
          %v1718 = vld [vmem:[#allocation13 + $0x38] sm:$0xff]
          %v1719 = vld [vmem:[#allocation13 + $0x40] sm:$0xff]
          %v1720 = vld [vmem:[#allocation13 + $0x48] sm:$0xff]
          %v1721 = vld [vmem:[#allocation13 + $0x50] sm:$0xff]
          %v1722 = vld [vmem:[#allocation13 + $0x58] sm:$0xff]
          %v1723 = vld [vmem:[#allocation13 + $0x60] sm:$0xff]
          %v1724 = vld [vmem:[#allocation13 + $0x68] sm:$0xff]
          %v1725 = vld [vmem:[#allocation13 + $0x70] sm:$0xff]
          %v1726 = vld [vmem:[#allocation13 + $0x78] sm:$0xff]
          %v1727 = vld [vmem:[%s9] sm:$0x1]
          %v1729 = vlaneseq
          %v1730 = vshrl.u32 %v1729, 7
          %v1731 = vsub.s32 0, %v1730
          %v1732 = vrot.slane %v1727, %v1731
          %1734 = vmatprep.subr.mxu0 0.0
          %1735 = vmatpush1.msra.mxu0 %v1711
          %1736 = vmatprep.subr.mxu0 0.0
          %1737 = vmatpush1.msra.mxu0 %v1712
          %1738 = vmatprep.subr.mxu0 0.0
          %1739 = vmatpush1.msra.mxu0 %v1713
          %1740 = vmatprep.subr.mxu0 0.0
          %1741 = vmatpush1.msra.mxu0 %v1714
          %1742 = vmatprep.subr.mxu0 0.0
          %1743 = vmatpush1.msra.mxu0 %v1715
          %1744 = vmatprep.subr.mxu0 0.0
          %1745 = vmatpush1.msra.mxu0 %v1716
          %1746 = vmatprep.subr.mxu0 0.0
          %1747 = vmatpush1.msra.mxu0 %v1717
          %1748 = vmatprep.subr.mxu0 0.0
          %1749 = vmatpush1.msra.mxu0 %v1718
          %1750 = vmatprep.subr.mxu0 0.0
          %1751 = vmatpush1.msra.mxu0 %v1719
          %1752 = vmatprep.subr.mxu0 0.0
          %1753 = vmatpush1.msra.mxu0 %v1720
          %1754 = vmatprep.subr.mxu0 0.0
          %1755 = vmatpush1.msra.mxu0 %v1721
          %1756 = vmatprep.subr.mxu0 0.0
          %1757 = vmatpush1.msra.mxu0 %v1722
          %1758 = vmatprep.subr.mxu0 0.0
          %1759 = vmatpush1.msra.mxu0 %v1723
          %1760 = vmatprep.subr.mxu0 0.0
          %1761 = vmatpush1.msra.mxu0 %v1724
          %1762 = vmatprep.subr.mxu0 0.0
          %1763 = vmatpush1.msra.mxu0 %v1725
          %1764 = vmatprep.subr.mxu0 0.0
          %1765 = vmatpush1.msra.mxu0 %v1726
          %1766 = vmatprep.subr.mxu0 0.0
          %1767 = vmatpush1.msra.mxu0 0.0
          %1768 = vmatprep.subr.mxu0 0.0
          %1769 = vmatpush1.msra.mxu0 0.0
          %1770 = vmatprep.subr.mxu0 0.0
          %1771 = vmatpush1.msra.mxu0 0.0
          %1772 = vmatprep.subr.mxu0 0.0
          %1773 = vmatpush1.msra.mxu0 0.0
          %1774 = vmatprep.subr.mxu0 0.0
          %1775 = vmatpush1.msra.mxu0 0.0
          %1776 = vmatprep.subr.mxu0 0.0
          %1777 = vmatpush1.msra.mxu0 0.0
          %1778 = vmatprep.subr.mxu0 0.0
          %1779 = vmatpush1.msra.mxu0 0.0
          %1780 = vmatprep.subr.mxu0 0.0
          %1781 = vmatpush1.msra.mxu0 0.0
          %1782 = vmatprep.subr.mxu0 0.0
          %1783 = vmatpush1.msra.mxu0 0.0
          %1784 = vmatprep.subr.mxu0 0.0
          %1785 = vmatpush1.msra.mxu0 0.0
          %1786 = vmatprep.subr.mxu0 0.0
          %1787 = vmatpush1.msra.mxu0 0.0
          %1788 = vmatprep.subr.mxu0 0.0
          %1789 = vmatpush1.msra.mxu0 0.0
          %1790 = vmatprep.subr.mxu0 0.0
          %1791 = vmatpush1.msra.mxu0 0.0
          %1792 = vmatprep.subr.mxu0 0.0
          %1793 = vmatpush1.msra.mxu0 0.0
          %1794 = vmatprep.subr.mxu0 0.0
          %1795 = vmatpush1.msra.mxu0 0.0
          %1796 = vmatprep.subr.mxu0 0.0
          %1797 = vmatpush1.msra.mxu0 0.0
          %1798 = vmatprep.mubr.f32.mxu0 0.0
          %1799 = vmatmul.mubr.f32.gmra.mrb[0].mxu0 %v1710
          %v1800 = vpop.f32.mrb[0].mxu0
          %v1801 = vadd.f32 %v1732, %v1800
          %v1802 = vpop.f32.mrb[0].mxu0
          %1803 = vdwg.mxu0
          %1804 = vst [vmem:[#allocation15] sm:$0xff] %v1801
        $region130: #{tpu_custom_call.1} parent=55 // pred_fallthru
          _
        // Predicated region
        $region131: #{tpu_custom_call.1} parent=55 // pred_check
          %p1805 = pneg %p266
        $region132: #{tpu_custom_call.1} parent=55 // pred_check_branch
          %1807 = sbr.rel (%p1805) target = $region134
        $region133: #{tpu_custom_call.1} parent=55 // pred_region
          %s1809 = ssub.s32 128, 128
          %1810 = vsyncadd [#allocation9], %s1809
          %s1812 = sshll.u32 [#allocation15], 4
          %s1813 = int_to_ptr.vmem [resolvable:$true] %s1812
          %1815 = dma.vmem_to_hbm [thread:$0]  %s1813, 128, %s10, [#allocation9]
        $region134: #{tpu_custom_call.1} parent=55 // pred_fallthru
          _
        // Predicated region
        $region135: #{tpu_custom_call.1} parent=55 // pred_check
          %p1816 = pneg %p266
        $region136: #{tpu_custom_call.1} parent=55 // pred_check_branch
          %1818 = sbr.rel (%p1816) target = $region138
        $region137: #{tpu_custom_call.1} parent=55 // pred_region
          %1819 = dma.done [#allocation9], 128
        $region138: #{tpu_custom_call.1} parent=55 // pred_fallthru
          _
      $region56: #{tpu_custom_call.1} parent=5 // pred_fallthru
        _
      %p1820 = scmp.le.s32.totalorder 2, %s22
      // Predicated region
      $region139: #{tpu_custom_call.1} parent=5 // pred_check
        %p1821 = pneg %p1820
      $region140: #{tpu_custom_call.1} parent=5 // pred_check_branch
        %1823 = sbr.rel (%p1821) target = $region142
      $region141: #{tpu_custom_call.1} parent=5 // pred_region
        %s1824 = ssub.s32 %s22, 2
      $region142: #{tpu_custom_call.1} parent=5 // pred_fallthru
        _
    $region6: #{tpu_custom_call.1} parent=1 // loop_footer
      %s26 = sadd.s32 1, %s22
    $region7: #{tpu_custom_call.1} parent=1 // loop_footer_branch
      %21 = sbr.rel target = $region3
    $region8: #{tpu_custom_call.1} parent=1 // loop_exit
      _
    %1825 = vsyncpa [#allocation8], 1
    %s1826 = scalar_lea.sflag [#allocation8], 1
    %1827 = vsyncpa %s1826, 1
    %1828 = vsyncpa [#allocation11], 1
    %s1829 = scalar_lea.sflag [#allocation11], 1
    %1830 = vsyncpa %s1829, 1
    %1831 = vsyncpa [#allocation14], 1
    %1832 = vsyncpa [#allocation9], 1
    %s1833 = scalar_lea.sflag [#allocation9], 1
    %1834 = vsyncpa %s1833, 1
  %1835 = vsyncmov [#allocation6]
  %s1836 = vpop.sfrf %1835
  %p1837 = scmp.eq.s32.totalorder %s1836, 0
  %p1838 = pneg %p1837
  %1840 = shalt.err (%p1838)

</llo_original>
